<compile_context>
chip_gen: v7x
topology: tpu7x:2x2x1
jax: 0.10.0
libtpu: 0.0.40
codegen_flags: <defaults>
</compile_context>

<pallas_src>
import functools

import jax
import jax.numpy as jnp
from jax import lax
from jax.experimental import pallas as pl
from jax.experimental.pallas import tpu as pltpu

LN_EPS = 1e-5
QPAD = 128            # lane-dense output width: col 0 = Q1, col 1 = Q2, rest 0
_LANE = 128


def _round_up(x, m):
    return (x + m - 1) // m * m


# -----------------------------------------------------------------------------
# Kernel
# -----------------------------------------------------------------------------
def _critic_kernel(
    obs_ref, act_ref,                        # activations (f32, cast in-kernel)
    wt_ref, bt_ref, g_ref, beta_ref,         # trunk Linear + LayerNorm params
    w1h_ref, w1a_ref, b1_ref,                # fused Q layer-1 (both heads)
    q1w2_ref, q1b2_ref,                      # Q1 layer-2
    q2w2_ref, q2b2_ref,                      # Q2 layer-2
    w3t_ref, w3b_ref, b3_ref,                # split, lane-padded Q layer-3
    out_ref,                                 # (TB, QPAD) f32
    acc_ref,                                 # (TB, Fpad) f32 trunk accumulator
    *, feature_dim, hidden_pad,
):
    k = pl.program_id(1)
    nk = pl.num_programs(1)

    @pl.when(k == 0)
    def _():
        acc_ref[...] = jnp.zeros_like(acc_ref)

    # ---- trunk matmul, streamed over the repr (K) dimension ----
    obs = obs_ref[...].astype(jnp.bfloat16)      # cast in VMEM, not in the wrapper
    acc_ref[...] += jnp.dot(obs, wt_ref[...], preferred_element_type=jnp.float32)

    @pl.when(k == nk - 1)
    def _():
        f_pad = acc_ref.shape[1]
        inv_d = 1.0 / feature_dim

        # LayerNorm over the TRUE feature width (two-pass, padded lanes masked),
        # then Tanh.  Padded lanes of t are exactly 0 (zero-padded weights/bias).
        t = acc_ref[...] + bt_ref[...]                           # (TB, Fpad) f32
        mu = jnp.sum(t, axis=-1, keepdims=True) * inv_d
        lane = lax.broadcasted_iota(jnp.int32, (1, f_pad), 1)
        d = jnp.where(lane < feature_dim, t - mu, 0.0)
        var = jnp.sum(d * d, axis=-1, keepdims=True) * inv_d
        h = jnp.tanh(d * lax.rsqrt(var + LN_EPS) * g_ref[...] + beta_ref[...])
        h = h.astype(jnp.bfloat16)

        act = act_ref[...].astype(jnp.bfloat16)

        # fused layer 1 for both heads: concat([h, act]) @ [W1_q1 | W1_q2]
        x1 = (jnp.dot(h, w1h_ref[...], preferred_element_type=jnp.float32)
              + jnp.dot(act, w1a_ref[...], preferred_element_type=jnp.float32)
              + b1_ref[...])
        x1 = jnp.maximum(x1, 0.0).astype(jnp.bfloat16)           # (TB, 2*Hpad)

        # per-head layer 2 (slices are lane-aligned: hidden_pad % 128 == 0)
        x2_1 = jnp.maximum(
            jnp.dot(x1[:, :hidden_pad], q1w2_ref[...],
                    preferred_element_type=jnp.float32) + q1b2_ref[...],
            0.0).astype(jnp.bfloat16)
        x2_2 = jnp.maximum(
            jnp.dot(x1[:, hidden_pad:], q2w2_ref[...],
                    preferred_element_type=jnp.float32) + q2b2_ref[...],
            0.0).astype(jnp.bfloat16)

        # split layer 3 (no concatenate): one unmasked lane-dense store.
        # TODO(synk): if profiling shows the MXU slot saturated, replace this
        # padded matmul with a VPU multiply + XLU lane-reduce into cols 0/1.
        out_ref[...] = (
            jnp.dot(x2_1, w3t_ref[...], preferred_element_type=jnp.float32)
            + jnp.dot(x2_2, w3b_ref[...], preferred_element_type=jnp.float32)
            + b3_ref[...])


# -----------------------------------------------------------------------------
# Parameter preparation (done ONCE, outside the per-call path)
# -----------------------------------------------------------------------------
def prepare_params(params, repr_dim, action_dim, feature_dim, hidden_dim):
    """Transpose / cast / fuse / lane-pad the torch-layout parameters."""
    bf16 = jnp.bfloat16
    f_pad = _round_up(feature_dim, _LANE)
    h_pad = _round_up(hidden_dim, _LANE)

    def pad2(x, rows, cols):
        x = jnp.asarray(x, jnp.float32)
        return jnp.zeros((rows, cols), jnp.float32).at[: x.shape[0], : x.shape[1]].set(x)

    # trunk (padded feature lanes: weight/bias/gamma/beta all 0 -> h_pad == 0)
    trunk_w = pad2(params["trunk_w"].T, repr_dim, f_pad).astype(bf16)   # (repr, Fp)
    trunk_b = pad2(params["trunk_b"][None, :], 1, f_pad)
    gamma = pad2(params["ln_gamma"][None, :], 1, f_pad)
    beta = pad2(params["ln_beta"][None, :], 1, f_pad)

    def head(prefix):
        w1 = params[prefix + "_w1"]                         # (H, feature + action)
        w1h = pad2(w1[:, :feature_dim].T, f_pad, h_pad)     # (Fp, Hp)
        w1a = pad2(w1[:, feature_dim:].T, action_dim, h_pad)
        b1 = pad2(params[prefix + "_b1"][None, :], 1, h_pad)
        w2 = pad2(params[prefix + "_w2"].T, h_pad, h_pad)
        b2 = pad2(params[prefix + "_b2"][None, :], 1, h_pad)
        return w1h, w1a, b1, w2, b2

    q1w1h, q1w1a, q1b1, q1w2, q1b2 = head("q1")
    q2w1h, q2w1a, q2b1, q2w2, q2b2 = head("q2")

    # fused Q layer 1: both heads concatenated along the output dim
    w1h = jnp.concatenate([q1w1h, q2w1h], axis=1).astype(bf16)   # (Fp, 2*Hp)
    w1a = jnp.concatenate([q1w1a, q2w1a], axis=1).astype(bf16)   # (act, 2*Hp)
    b1 = jnp.concatenate([q1b1, q2b1], axis=1)                   # (1, 2*Hp) f32

    # split layer 3: Q1 -> column 0 of w3_top, Q2 -> column 1 of w3_bot
    w3_top = jnp.zeros((h_pad, QPAD), jnp.float32).at[:hidden_dim, 0].set(
        params["q1_w3"][0]).astype(bf16)
    w3_bot = jnp.zeros((h_pad, QPAD), jnp.float32).at[:hidden_dim, 1].set(
        params["q2_w3"][0]).astype(bf16)
    b3 = (jnp.zeros((1, QPAD), jnp.float32)
          .at[0, 0].set(params["q1_b3"][0])
          .at[0, 1].set(params["q2_b3"][0]))

    weights = (trunk_w, trunk_b, gamma, beta, w1h, w1a, b1,
               q1w2.astype(bf16), q1b2, q2w2.astype(bf16), q2b2,
               w3_top, w3_bot, b3)
    return {"weights": weights, "feature_dim": feature_dim,
            "feature_pad": f_pad, "hidden_pad": h_pad}


def _pick_batch_tile(B):
    """Batch tile: MXU-friendly multiple of 128 when possible, >=2 grid steps,
    never below 16 rows (bf16 sublane packing)."""
    for tb in (512, 256, 128, 64, 32, 16):
        if B % tb == 0 and B // tb >= 2:
            return tb
    for tb in (512, 256, 128, 64, 32, 16):
        if B % tb == 0:
            return tb
    return B          # full-array block (exempt from the (8, 128) rule)


def _pick_k_tile(repr_dim):
    """Stream the trunk K (repr) dim in 128-aligned tiles when it divides evenly."""
    if repr_dim % _LANE == 0:
        for tk in (1024, 512, 256, 128):
            if repr_dim % tk == 0 and repr_dim // tk >= 2:
                return tk
    return repr_dim   # single K step (full dim)


# -----------------------------------------------------------------------------
# Forward wrapper
# -----------------------------------------------------------------------------
def critic_forward(obs, action, prepared):
    """obs: (B, repr_dim), action: (B, action_dim) -> (q1, q2), each (B, 1)."""
    B, repr_dim = obs.shape
    action_dim = action.shape[1]
    weights = prepared["weights"]
    feature_dim = prepared["feature_dim"]
    f_pad = prepared["feature_pad"]
    h_pad = prepared["hidden_pad"]
    trunk_w = weights[0]

    TB = _pick_batch_tile(B)
    TK = _pick_k_tile(repr_dim)
    grid = (B // TB, repr_dim // TK)

    # obs / action keep their input dtype (f32); the bf16 cast happens inside
    # the kernel so there is no separate XLA copy pass over the big obs array.
    def resident(arr):
        # Grid-invariant weights: single VMEM buffer (no double buffering).
        return pl.BlockSpec(arr.shape, lambda i, k: (0, 0),
                            pipeline_mode=pl.Buffered(1))

    in_specs = [
        pl.BlockSpec((TB, TK), lambda i, k: (i, k)),           # obs (streamed over K)
        pl.BlockSpec((TB, action_dim), lambda i, k: (i, 0)),   # action
        pl.BlockSpec((TK, f_pad), lambda i, k: (k, 0)),        # trunk_w (streams with K)
    ] + [resident(w) for w in weights[1:]]
    out_specs = pl.BlockSpec((TB, QPAD), lambda i, k: (i, 0))

    # VMEM budget from actual buffer sizes (weights x1, streamed tiles x2,
    # accumulator scratch), with margin; capped below every chip's physical VMEM.
    resident_bytes = sum(int(w.size) * w.dtype.itemsize for w in weights[1:])
    streamed_bytes = 2 * (TK * f_pad * trunk_w.dtype.itemsize
                          + TB * TK * obs.dtype.itemsize
                          + TB * action_dim * action.dtype.itemsize
                          + TB * QPAD * 4)
    scratch_bytes = TB * f_pad * 4
    vmem_needed = resident_bytes + streamed_bytes + scratch_bytes
    vmem_limit = int(min(max(2 * vmem_needed, 16 << 20), 64 << 20))

    flops = 2 * B * (repr_dim * f_pad
                     + (f_pad + action_dim) * 2 * h_pad
                     + 2 * h_pad * h_pad
                     + 2 * h_pad * QPAD)
    bytes_accessed = (int(obs.nbytes) + int(action.nbytes)
                      + sum(int(w.nbytes) for w in weights) + B * QPAD * 4)
    cost = pl.CostEstimate(flops=int(flops), transcendentals=int(B * f_pad),
                           bytes_accessed=int(bytes_accessed))

    kernel = functools.partial(_critic_kernel,
                               feature_dim=feature_dim, hidden_pad=h_pad)

    out = pl.pallas_call(
        kernel,
        out_shape=jax.ShapeDtypeStruct((B, QPAD), jnp.float32),
        grid=grid,
        in_specs=in_specs,
        out_specs=out_specs,
        scratch_shapes=[pltpu.VMEM((TB, f_pad), jnp.float32)],
        compiler_params=pltpu.CompilerParams(
            dimension_semantics=("parallel", "arbitrary"),
            vmem_limit_bytes=vmem_limit,
        ),
        cost_estimate=cost,
    )(obs, action, *weights)

    return out[:, 0:1], out[:, 1:2]


# -----------------------------------------------------------------------------
# Synthetic init (torch Linear layout: weight is (out_features, in_features))
# -----------------------------------------------------------------------------
def init_params(key, repr_dim, action_dim, feature_dim, hidden_dim):
    keys = jax.random.split(key, 16)

    def lin(k, out_f, in_f, scale=0.1):
        return scale * jax.random.normal(k, (out_f, in_f), jnp.float32)

    p = {
        "trunk_w": lin(keys[0], feature_dim, repr_dim),
        "trunk_b": 0.01 * jax.random.normal(keys[1], (feature_dim,), jnp.float32),
        "ln_gamma": jnp.ones((feature_dim,), jnp.float32),
        "ln_beta": jnp.zeros((feature_dim,), jnp.float32),
    }
    in_cat = feature_dim + action_dim
    for i, prefix in enumerate(("q1", "q2")):
        base = 2 + i * 6
        p[prefix + "_w1"] = lin(keys[base + 0], hidden_dim, in_cat)
        p[prefix + "_b1"] = 0.01 * jax.random.normal(keys[base + 1], (hidden_dim,), jnp.float32)
        p[prefix + "_w2"] = lin(keys[base + 2], hidden_dim, hidden_dim)
        p[prefix + "_b2"] = 0.01 * jax.random.normal(keys[base + 3], (hidden_dim,), jnp.float32)
        p[prefix + "_w3"] = lin(keys[base + 4], 1, hidden_dim)
        p[prefix + "_b3"] = 0.01 * jax.random.normal(keys[base + 5], (1,), jnp.float32)
    return p


def _reference_forward(obs, action, p):
    """Pure-f32 JAX reference mirroring the torch forward."""
    t = obs @ p["trunk_w"].T + p["trunk_b"]
    mu = t.mean(-1, keepdims=True)
    var = ((t - mu) ** 2).mean(-1, keepdims=True)
    h = jnp.tanh((t - mu) / jnp.sqrt(var + LN_EPS) * p["ln_gamma"] + p["ln_beta"])
    ha = jnp.concatenate([h, action], axis=-1)

    def q(prefix):
        x = jnp.maximum(ha @ p[prefix + "_w1"].T + p[prefix + "_b1"], 0.0)
        x = jnp.maximum(x @ p[prefix + "_w2"].T + p[prefix + "_b2"], 0.0)
        return x @ p[prefix + "_w3"].T + p[prefix + "_b3"]

    return q("q1"), q("q2")


if __name__ == "__main__":
    B = 32
    repr_dim = 256        # exercises the K-streamed trunk (2 K tiles of 128)
    action_dim = 4
    feature_dim = 16
    hidden_dim = 32

    key = jax.random.PRNGKey(0)
    k_obs, k_act, k_par = jax.random.split(key, 3)
    obs = jax.random.normal(k_obs, (B, repr_dim), jnp.float32)
    action = jax.random.normal(k_act, (B, action_dim), jnp.float32)
    params = init_params(k_par, repr_dim, action_dim, feature_dim, hidden_dim)

    prepared = prepare_params(params, repr_dim, action_dim, feature_dim, hidden_dim)

    q1, q2 = critic_forward(obs, action, prepared)
    jax.block_until_ready((q1, q2))

    q1_ref, q2_ref = _reference_forward(obs, action, params)
    assert q1.shape == (B, 1) and q2.shape == (B, 1)
    # bf16 matmul operands (f32 accumulation) => modest tolerance vs. f32 ref.
    assert jnp.allclose(q1, q1_ref, atol=3e-2, rtol=3e-2)
    assert jnp.allclose(q2, q2_ref, atol=3e-2, rtol=3e-2)

    print("KERNEL_OK")
</pallas_src>

<mosaic_0001>
module attributes {stable_mosaic.version = 11 : i64} {
  func.func @_critic_kernel(%arg0: i32, %arg1: i32, %arg2: memref<16x128xf32, #tpu.memory_space<vmem>>, %arg3: memref<16x4xf32, #tpu.memory_space<vmem>>, %arg4: memref<128x128xbf16, #tpu.memory_space<vmem>>, %arg5: memref<1x128xf32, #tpu.memory_space<vmem>>, %arg6: memref<1x128xf32, #tpu.memory_space<vmem>>, %arg7: memref<1x128xf32, #tpu.memory_space<vmem>>, %arg8: memref<128x256xbf16, #tpu.memory_space<vmem>>, %arg9: memref<4x256xbf16, #tpu.memory_space<vmem>>, %arg10: memref<1x256xf32, #tpu.memory_space<vmem>>, %arg11: memref<128x128xbf16, #tpu.memory_space<vmem>>, %arg12: memref<1x128xf32, #tpu.memory_space<vmem>>, %arg13: memref<128x128xbf16, #tpu.memory_space<vmem>>, %arg14: memref<1x128xf32, #tpu.memory_space<vmem>>, %arg15: memref<128x128xbf16, #tpu.memory_space<vmem>>, %arg16: memref<128x128xbf16, #tpu.memory_space<vmem>>, %arg17: memref<1x128xf32, #tpu.memory_space<vmem>>, %arg18: memref<16x128xf32, #tpu.memory_space<vmem>>, %arg19: memref<16x128xf32, #tpu.memory_space<vmem>>) attributes {dimension_semantics = [#tpu.dimension_semantics<parallel>, #tpu.dimension_semantics<arbitrary>], iteration_bounds = array<i64: 2, 2>, scalar_prefetch = 0 : i64, scratch_operands = 1 : i64, tpu.core_type = #tpu.core_type<tc>, window_params = [{transform_indices = @transform_0, window_bounds = array<i64: 16, 128>}, {transform_indices = @transform_1, window_bounds = array<i64: 16, 4>}, {transform_indices = @transform_2, window_bounds = array<i64: 128, 128>}, {pipeline_mode = #tpu.pipeline_mode<synchronous>, transform_indices = @transform_3, window_bounds = array<i64: 1, 128>}, {pipeline_mode = #tpu.pipeline_mode<synchronous>, transform_indices = @transform_4, window_bounds = array<i64: 1, 128>}, {pipeline_mode = #tpu.pipeline_mode<synchronous>, transform_indices = @transform_5, window_bounds = array<i64: 1, 128>}, {pipeline_mode = #tpu.pipeline_mode<synchronous>, transform_indices = @transform_6, window_bounds = array<i64: 128, 256>}, {pipeline_mode = #tpu.pipeline_mode<synchronous>, transform_indices = @transform_7, window_bounds = array<i64: 4, 256>}, {pipeline_mode = #tpu.pipeline_mode<synchronous>, transform_indices = @transform_8, window_bounds = array<i64: 1, 256>}, {pipeline_mode = #tpu.pipeline_mode<synchronous>, transform_indices = @transform_9, window_bounds = array<i64: 128, 128>}, {pipeline_mode = #tpu.pipeline_mode<synchronous>, transform_indices = @transform_10, window_bounds = array<i64: 1, 128>}, {pipeline_mode = #tpu.pipeline_mode<synchronous>, transform_indices = @transform_11, window_bounds = array<i64: 128, 128>}, {pipeline_mode = #tpu.pipeline_mode<synchronous>, transform_indices = @transform_12, window_bounds = array<i64: 1, 128>}, {pipeline_mode = #tpu.pipeline_mode<synchronous>, transform_indices = @transform_13, window_bounds = array<i64: 128, 128>}, {pipeline_mode = #tpu.pipeline_mode<synchronous>, transform_indices = @transform_14, window_bounds = array<i64: 128, 128>}, {pipeline_mode = #tpu.pipeline_mode<synchronous>, transform_indices = @transform_15, window_bounds = array<i64: 1, 128>}, {transform_indices = @transform_16, window_bounds = array<i64: 16, 128>}]} {
    %c0_i32 = arith.constant 0 : i32
    %0 = arith.cmpi eq, %arg1, %c0_i32 : i32
    %1 = arith.extui %0 : i1 to i32
    %c0_i32_0 = arith.constant 0 : i32
    %2 = arith.cmpi ne, %1, %c0_i32_0 : i32
    scf.if %2 {
      %cst_9 = arith.constant 0.000000e+00 : f32
      %13 = vector.broadcast %cst_9 : f32 to vector<16x128xf32>
      %c0_10 = arith.constant 0 : index
      %c0_11 = arith.constant 0 : index
      %14 = vector.load %arg19[%c0_10, %c0_11] : memref<16x128xf32, #tpu.memory_space<vmem>>, vector<16x128xf32>
      tpu.vector_store %arg19[%c0_10, %c0_11], %13 {strides = array<i32>} : memref<16x128xf32, #tpu.memory_space<vmem>>, vector<16x128xf32>,
    } else {
    }
    %c0 = arith.constant 0 : index
    %c0_1 = arith.constant 0 : index
    %3 = vector.load %arg2[%c0, %c0_1] : memref<16x128xf32, #tpu.memory_space<vmem>>, vector<16x128xf32>
    %4 = arith.truncf %3 : vector<16x128xf32> to vector<16x128xbf16>
    %c0_2 = arith.constant 0 : index
    %c0_3 = arith.constant 0 : index
    %5 = vector.load %arg19[%c0_2, %c0_3] : memref<16x128xf32, #tpu.memory_space<vmem>>, vector<16x128xf32>
    %c0_4 = arith.constant 0 : index
    %c0_5 = arith.constant 0 : index
    %6 = vector.load %arg4[%c0_4, %c0_5] : memref<128x128xbf16, #tpu.memory_space<vmem>>, vector<128x128xbf16>
    %cst = arith.constant dense<0.000000e+00> : vector<16x128xf32>
    %7 = tpu.matmul %4, %6, %cst {dimension_numbers = #tpu.dot_dimension_numbers<[1], [0], [0], [1], [0, 0, 1, 1], [], []>} : vector<16x128xbf16>, vector<128x128xbf16>, vector<16x128xf32> -> vector<16x128xf32>
    %8 = arith.addf %5, %7 : vector<16x128xf32>
    %c0_6 = arith.constant 0 : index
    %c0_7 = arith.constant 0 : index
    %9 = vector.load %arg19[%c0_6, %c0_7] : memref<16x128xf32, #tpu.memory_space<vmem>>, vector<16x128xf32>
    tpu.vector_store %arg19[%c0_6, %c0_7], %8 {strides = array<i32>} : memref<16x128xf32, #tpu.memory_space<vmem>>, vector<16x128xf32>,
    %c1_i32 = arith.constant 1 : i32
    %10 = arith.cmpi eq, %arg1, %c1_i32 : i32
    %11 = arith.extui %10 : i1 to i32
    %c0_i32_8 = arith.constant 0 : i32
    %12 = arith.cmpi ne, %11, %c0_i32_8 : i32
    scf.if %12 {
      %c0_9 = arith.constant 0 : index
      %c0_10 = arith.constant 0 : index
      %13 = vector.load %arg19[%c0_9, %c0_10] : memref<16x128xf32, #tpu.memory_space<vmem>>, vector<16x128xf32>
      %c0_11 = arith.constant 0 : index
      %c0_12 = arith.constant 0 : index
      %14 = vector.load %arg5[%c0_11, %c0_12] : memref<1x128xf32, #tpu.memory_space<vmem>>, vector<1x128xf32>
      %15 = vector.broadcast %14 : vector<1x128xf32> to vector<16x128xf32>
      %16 = arith.addf %13, %15 : vector<16x128xf32>
      %cst_13 = arith.constant dense<0.000000e+00> : vector<16xf32>
      %17 = vector.multi_reduction <add>, %16, %cst_13 [1] : vector<16x128xf32> to vector<16xf32>
      %18 = vector.shape_cast %17 : vector<16xf32> to vector<16x1xf32>
      %cst_14 = arith.constant 6.250000e-02 : f32
      %19 = vector.broadcast %cst_14 : f32 to vector<16x1xf32>
      %20 = arith.mulf %18, %19 : vector<16x1xf32>
      %21 = tpu.iota {dimensions = array<i32: 1>} : vector<1x128xi32>
      %c16_i32 = arith.constant 16 : i32
      %22 = vector.broadcast %c16_i32 : i32 to vector<1x128xi32>
      %23 = arith.cmpi slt, %21, %22 : vector<1x128xi32>
      %24 = vector.broadcast %20 : vector<16x1xf32> to vector<16x128xf32>
      %25 = arith.subf %16, %24 : vector<16x128xf32>
      %cst_15 = arith.constant 0.000000e+00 : f32
      %26 = vector.shape_cast %23 : vector<1x128xi1> to vector<1x128xi1>
      %27 = vector.broadcast %26 : vector<1x128xi1> to vector<16x128xi1>
      %28 = vector.broadcast %cst_15 : f32 to vector<16x128xf32>
      %29 = arith.select %27, %25, %28 : vector<16x128xi1>, vector<16x128xf32>
      %30 = arith.mulf %29, %29 : vector<16x128xf32>
      %cst_16 = arith.constant dense<0.000000e+00> : vector<16xf32>
      %31 = vector.multi_reduction <add>, %30, %cst_16 [1] : vector<16x128xf32> to vector<16xf32>
      %32 = vector.shape_cast %31 : vector<16xf32> to vector<16x1xf32>
      %cst_17 = arith.constant 6.250000e-02 : f32
      %33 = vector.broadcast %cst_17 : f32 to vector<16x1xf32>
      %34 = arith.mulf %32, %33 : vector<16x1xf32>
      %cst_18 = arith.constant 9.99999974E-6 : f32
      %35 = vector.broadcast %cst_18 : f32 to vector<16x1xf32>
      %36 = arith.addf %34, %35 : vector<16x1xf32>
      %37 = math.rsqrt %36 : vector<16x1xf32>
      %38 = vector.broadcast %37 : vector<16x1xf32> to vector<16x128xf32>
      %39 = arith.mulf %29, %38 : vector<16x128xf32>
      %c0_19 = arith.constant 0 : index
      %c0_20 = arith.constant 0 : index
      %40 = vector.load %arg6[%c0_19, %c0_20] : memref<1x128xf32, #tpu.memory_space<vmem>>, vector<1x128xf32>
      %41 = vector.broadcast %40 : vector<1x128xf32> to vector<16x128xf32>
      %42 = arith.mulf %39, %41 : vector<16x128xf32>
      %c0_21 = arith.constant 0 : index
      %c0_22 = arith.constant 0 : index
      %43 = vector.load %arg7[%c0_21, %c0_22] : memref<1x128xf32, #tpu.memory_space<vmem>>, vector<1x128xf32>
      %44 = vector.broadcast %43 : vector<1x128xf32> to vector<16x128xf32>
      %45 = arith.addf %42, %44 : vector<16x128xf32>
      %46 = math.tanh %45 : vector<16x128xf32>
      %47 = arith.truncf %46 : vector<16x128xf32> to vector<16x128xbf16>
      %c0_23 = arith.constant 0 : index
      %c0_24 = arith.constant 0 : index
      %48 = vector.load %arg3[%c0_23, %c0_24] : memref<16x4xf32, #tpu.memory_space<vmem>>, vector<16x4xf32>
      %49 = arith.truncf %48 : vector<16x4xf32> to vector<16x4xbf16>
      %c0_25 = arith.constant 0 : index
      %c0_26 = arith.constant 0 : index
      %50 = vector.load %arg8[%c0_25, %c0_26] : memref<128x256xbf16, #tpu.memory_space<vmem>>, vector<128x256xbf16>
      %cst_27 = arith.constant dense<0.000000e+00> : vector<16x256xf32>
      %51 = tpu.matmul %47, %50, %cst_27 {dimension_numbers = #tpu.dot_dimension_numbers<[1], [0], [0], [1], [0, 0, 1, 1], [], []>} : vector<16x128xbf16>, vector<128x256xbf16>, vector<16x256xf32> -> vector<16x256xf32>
      %c0_28 = arith.constant 0 : index
      %c0_29 = arith.constant 0 : index
      %52 = vector.load %arg9[%c0_28, %c0_29] : memref<4x256xbf16, #tpu.memory_space<vmem>>, vector<4x256xbf16>
      %cst_30 = arith.constant dense<0.000000e+00> : vector<16x256xf32>
      %53 = tpu.matmul %49, %52, %cst_30 {dimension_numbers = #tpu.dot_dimension_numbers<[1], [0], [0], [1], [0, 0, 1, 1], [], []>} : vector<16x4xbf16>, vector<4x256xbf16>, vector<16x256xf32> -> vector<16x256xf32>
      %54 = arith.addf %51, %53 : vector<16x256xf32>
      %c0_31 = arith.constant 0 : index
      %c0_32 = arith.constant 0 : index
      %55 = vector.load %arg10[%c0_31, %c0_32] : memref<1x256xf32, #tpu.memory_space<vmem>>, vector<1x256xf32>
      %56 = vector.broadcast %55 : vector<1x256xf32> to vector<16x256xf32>
      %57 = arith.addf %54, %56 : vector<16x256xf32>
      %cst_33 = arith.constant 0.000000e+00 : f32
      %58 = vector.broadcast %cst_33 : f32 to vector<16x256xf32>
      %59 = arith.maximumf %57, %58 : vector<16x256xf32>
      %60 = arith.truncf %59 : vector<16x256xf32> to vector<16x256xbf16>
      %61 = vector.extract_strided_slice %60 {offsets = [0, 0], sizes = [16, 128], strides = [1, 1]} : vector<16x256xbf16> to vector<16x128xbf16>
      %c0_34 = arith.constant 0 : index
      %c0_35 = arith.constant 0 : index
      %62 = vector.load %arg11[%c0_34, %c0_35] : memref<128x128xbf16, #tpu.memory_space<vmem>>, vector<128x128xbf16>
      %cst_36 = arith.constant dense<0.000000e+00> : vector<16x128xf32>
      %63 = tpu.matmul %61, %62, %cst_36 {dimension_numbers = #tpu.dot_dimension_numbers<[1], [0], [0], [1], [0, 0, 1, 1], [], []>} : vector<16x128xbf16>, vector<128x128xbf16>, vector<16x128xf32> -> vector<16x128xf32>
      %c0_37 = arith.constant 0 : index
      %c0_38 = arith.constant 0 : index
      %64 = vector.load %arg12[%c0_37, %c0_38] : memref<1x128xf32, #tpu.memory_space<vmem>>, vector<1x128xf32>
      %65 = vector.broadcast %64 : vector<1x128xf32> to vector<16x128xf32>
      %66 = arith.addf %63, %65 : vector<16x128xf32>
      %cst_39 = arith.constant 0.000000e+00 : f32
      %67 = vector.broadcast %cst_39 : f32 to vector<16x128xf32>
      %68 = arith.maximumf %66, %67 : vector<16x128xf32>
      %69 = arith.truncf %68 : vector<16x128xf32> to vector<16x128xbf16>
      %70 = vector.extract_strided_slice %60 {offsets = [0, 128], sizes = [16, 128], strides = [1, 1]} : vector<16x256xbf16> to vector<16x128xbf16>
      %c0_40 = arith.constant 0 : index
      %c0_41 = arith.constant 0 : index
      %71 = vector.load %arg13[%c0_40, %c0_41] : memref<128x128xbf16, #tpu.memory_space<vmem>>, vector<128x128xbf16>
      %cst_42 = arith.constant dense<0.000000e+00> : vector<16x128xf32>
      %72 = tpu.matmul %70, %71, %cst_42 {dimension_numbers = #tpu.dot_dimension_numbers<[1], [0], [0], [1], [0, 0, 1, 1], [], []>} : vector<16x128xbf16>, vector<128x128xbf16>, vector<16x128xf32> -> vector<16x128xf32>
      %c0_43 = arith.constant 0 : index
      %c0_44 = arith.constant 0 : index
      %73 = vector.load %arg14[%c0_43, %c0_44] : memref<1x128xf32, #tpu.memory_space<vmem>>, vector<1x128xf32>
      %74 = vector.broadcast %73 : vector<1x128xf32> to vector<16x128xf32>
      %75 = arith.addf %72, %74 : vector<16x128xf32>
      %cst_45 = arith.constant 0.000000e+00 : f32
      %76 = vector.broadcast %cst_45 : f32 to vector<16x128xf32>
      %77 = arith.maximumf %75, %76 : vector<16x128xf32>
      %78 = arith.truncf %77 : vector<16x128xf32> to vector<16x128xbf16>
      %c0_46 = arith.constant 0 : index
      %c0_47 = arith.constant 0 : index
      %79 = vector.load %arg15[%c0_46, %c0_47] : memref<128x128xbf16, #tpu.memory_space<vmem>>, vector<128x128xbf16>
      %cst_48 = arith.constant dense<0.000000e+00> : vector<16x128xf32>
      %80 = tpu.matmul %69, %79, %cst_48 {dimension_numbers = #tpu.dot_dimension_numbers<[1], [0], [0], [1], [0, 0, 1, 1], [], []>} : vector<16x128xbf16>, vector<128x128xbf16>, vector<16x128xf32> -> vector<16x128xf32>
      %c0_49 = arith.constant 0 : index
      %c0_50 = arith.constant 0 : index
      %81 = vector.load %arg16[%c0_49, %c0_50] : memref<128x128xbf16, #tpu.memory_space<vmem>>, vector<128x128xbf16>
      %cst_51 = arith.constant dense<0.000000e+00> : vector<16x128xf32>
      %82 = tpu.matmul %78, %81, %cst_51 {dimension_numbers = #tpu.dot_dimension_numbers<[1], [0], [0], [1], [0, 0, 1, 1], [], []>} : vector<16x128xbf16>, vector<128x128xbf16>, vector<16x128xf32> -> vector<16x128xf32>
      %83 = arith.addf %80, %82 : vector<16x128xf32>
      %c0_52 = arith.constant 0 : index
      %c0_53 = arith.constant 0 : index
      %84 = vector.load %arg17[%c0_52, %c0_53] : memref<1x128xf32, #tpu.memory_space<vmem>>, vector<1x128xf32>
      %85 = vector.broadcast %84 : vector<1x128xf32> to vector<16x128xf32>
      %86 = arith.addf %83, %85 : vector<16x128xf32>
      %c0_54 = arith.constant 0 : index
      %c0_55 = arith.constant 0 : index
      %87 = vector.load %arg18[%c0_54, %c0_55] : memref<16x128xf32, #tpu.memory_space<vmem>>, vector<16x128xf32>
      tpu.vector_store %arg18[%c0_54, %c0_55], %86 {strides = array<i32>} : memref<16x128xf32, #tpu.memory_space<vmem>>, vector<16x128xf32>,
    } else {
    }
    return
  }
  func.func @transform_0(%arg0: i32, %arg1: i32) -> (i32, i32) {
    %c0_i32 = arith.constant 0 : i32
    return %arg0, %arg1 : i32, i32
  }
  func.func @transform_1(%arg0: i32, %arg1: i32) -> (i32, i32) {
    %c0_i32 = arith.constant 0 : i32
    %c0_i32_0 = arith.constant 0 : i32
    return %arg0, %c0_i32 : i32, i32
  }
  func.func @transform_2(%arg0: i32, %arg1: i32) -> (i32, i32) {
    %c0_i32 = arith.constant 0 : i32
    %c0_i32_0 = arith.constant 0 : i32
    return %arg1, %c0_i32 : i32, i32
  }
  func.func @transform_3(%arg0: i32, %arg1: i32) -> (i32, i32) {
    %c0_i32 = arith.constant 0 : i32
    %c0_i32_0 = arith.constant 0 : i32
    %c0_i32_1 = arith.constant 0 : i32
    return %c0_i32, %c0_i32_0 : i32, i32
  }
  func.func @transform_4(%arg0: i32, %arg1: i32) -> (i32, i32) {
    %c0_i32 = arith.constant 0 : i32
    %c0_i32_0 = arith.constant 0 : i32
    %c0_i32_1 = arith.constant 0 : i32
    return %c0_i32, %c0_i32_0 : i32, i32
  }
  func.func @transform_5(%arg0: i32, %arg1: i32) -> (i32, i32) {
    %c0_i32 = arith.constant 0 : i32
    %c0_i32_0 = arith.constant 0 : i32
    %c0_i32_1 = arith.constant 0 : i32
    return %c0_i32, %c0_i32_0 : i32, i32
  }
  func.func @transform_6(%arg0: i32, %arg1: i32) -> (i32, i32) {
    %c0_i32 = arith.constant 0 : i32
    %c0_i32_0 = arith.constant 0 : i32
    %c0_i32_1 = arith.constant 0 : i32
    return %c0_i32, %c0_i32_0 : i32, i32
  }
  func.func @transform_7(%arg0: i32, %arg1: i32) -> (i32, i32) {
    %c0_i32 = arith.constant 0 : i32
    %c0_i32_0 = arith.constant 0 : i32
    %c0_i32_1 = arith.constant 0 : i32
    return %c0_i32, %c0_i32_0 : i32, i32
  }
  func.func @transform_8(%arg0: i32, %arg1: i32) -> (i32, i32) {
    %c0_i32 = arith.constant 0 : i32
    %c0_i32_0 = arith.constant 0 : i32
    %c0_i32_1 = arith.constant 0 : i32
    return %c0_i32, %c0_i32_0 : i32, i32
  }
  func.func @transform_9(%arg0: i32, %arg1: i32) -> (i32, i32) {
    %c0_i32 = arith.constant 0 : i32
    %c0_i32_0 = arith.constant 0 : i32
    %c0_i32_1 = arith.constant 0 : i32
    return %c0_i32, %c0_i32_0 : i32, i32
  }
  func.func @transform_10(%arg0: i32, %arg1: i32) -> (i32, i32) {
    %c0_i32 = arith.constant 0 : i32
    %c0_i32_0 = arith.constant 0 : i32
    %c0_i32_1 = arith.constant 0 : i32
    return %c0_i32, %c0_i32_0 : i32, i32
  }
  func.func @transform_11(%arg0: i32, %arg1: i32) -> (i32, i32) {
    %c0_i32 = arith.constant 0 : i32
    %c0_i32_0 = arith.constant 0 : i32
    %c0_i32_1 = arith.constant 0 : i32
    return %c0_i32, %c0_i32_0 : i32, i32
  }
  func.func @transform_12(%arg0: i32, %arg1: i32) -> (i32, i32) {
    %c0_i32 = arith.constant 0 : i32
    %c0_i32_0 = arith.constant 0 : i32
    %c0_i32_1 = arith.constant 0 : i32
    return %c0_i32, %c0_i32_0 : i32, i32
  }
  func.func @transform_13(%arg0: i32, %arg1: i32) -> (i32, i32) {
    %c0_i32 = arith.constant 0 : i32
    %c0_i32_0 = arith.constant 0 : i32
    %c0_i32_1 = arith.constant 0 : i32
    return %c0_i32, %c0_i32_0 : i32, i32
  }
  func.func @transform_14(%arg0: i32, %arg1: i32) -> (i32, i32) {
    %c0_i32 = arith.constant 0 : i32
    %c0_i32_0 = arith.constant 0 : i32
    %c0_i32_1 = arith.constant 0 : i32
    return %c0_i32, %c0_i32_0 : i32, i32
  }
  func.func @transform_15(%arg0: i32, %arg1: i32) -> (i32, i32) {
    %c0_i32 = arith.constant 0 : i32
    %c0_i32_0 = arith.constant 0 : i32
    %c0_i32_1 = arith.constant 0 : i32
    return %c0_i32, %c0_i32_0 : i32, i32
  }
  func.func @transform_16(%arg0: i32, %arg1: i32) -> (i32, i32) {
    %c0_i32 = arith.constant 0 : i32
    %c0_i32_0 = arith.constant 0 : i32
    return %arg0, %c0_i32 : i32, i32
  }
}

</mosaic_0001>

<llo_original>
// kernel: tpu_custom_call.1
$region0: #{tpu_custom_call.1}
  #allocation0 [shape = 'u32[]', space=smem, size = 0x4, offset = 0x4, fixed_abs, tag = 'smem constant byte address 0x4 - core index']
  #allocation1 [shape = 'u32[144,128]{1,0:T(1,128)}', space=vmem, size = 0x12000, scoped, tag = 'internal scratch']
  #allocation2 [shape = 'f32[16,128]{1,0:T(8,128)}', space=vmem, size = 0x2000, scoped, tag = 'scratch operand']
  %s0 = inlined_call_operand.hbm [shape: f32[32,256], index: 0, kind: input, shape index: {}]
  %s1 = inlined_call_operand.vmem [shape: f32[32,4], index: 1, kind: input, shape index: {}]
  %s2 = inlined_call_operand.hbm [shape: bf16[256,128], index: 2, kind: input, shape index: {}]
  %s3 = inlined_call_operand.hbm [shape: f32[1,128], index: 3, kind: input, shape index: {}]
  %s4 = inlined_call_operand.hbm [shape: f32[1,128], index: 4, kind: input, shape index: {}]
  %s5 = inlined_call_operand.hbm [shape: f32[1,128], index: 5, kind: input, shape index: {}]
  %s6 = inlined_call_operand.hbm [shape: bf16[128,256], index: 6, kind: input, shape index: {}]
  %s7 = inlined_call_operand.vmem [shape: bf16[4,256], index: 7, kind: input, shape index: {}]
  %s8 = inlined_call_operand.vmem [shape: f32[1,256], index: 8, kind: input, shape index: {}]
  %s9 = inlined_call_operand.vmem [shape: bf16[128,128], index: 9, kind: input, shape index: {}]
  %s10 = inlined_call_operand.vmem [shape: f32[1,128], index: 10, kind: input, shape index: {}]
  %s11 = inlined_call_operand.hbm [shape: bf16[128,128], index: 11, kind: input, shape index: {}]
  %s12 = inlined_call_operand.vmem [shape: f32[1,128], index: 12, kind: input, shape index: {}]
  %s13 = inlined_call_operand.hbm [shape: bf16[128,128], index: 13, kind: input, shape index: {}]
  %s14 = inlined_call_operand.hbm [shape: bf16[128,128], index: 14, kind: input, shape index: {}]
  %s15 = inlined_call_operand.vmem [shape: f32[1,128], index: 15, kind: input, shape index: {}]
  %s16 = inlined_call_operand.hbm [shape: f32[32,128], index: 16, kind: output, shape index: {}]
  %s17 = sld [smem:[#allocation0]]
  $region141: #{tpu_custom_call.1} parent=0
    _
  %s19 = ssub.s32 1, %s17
  %s20 = scalar_select 0, %s19, %s17
  $region1: #{tpu_custom_call.1} parent=0
    #allocation3 [shape = 'u8[16384]{0}', space=vmem, size = 0x4000, scoped, tag = 'input window, operand 0']
    #allocation4 [shape = 's32[2]{0}', space=sflag, size = 0x8, scoped, tag = 'scoped memory for tpu_custom_call.1']
    #allocation5 [shape = 's32[2]{0}', space=sflag, size = 0x8, scoped, tag = 'scoped memory for tpu_custom_call.1']
    #allocation6 [shape = 'u8[65536]{0}', space=vmem, size = 0x10000, scoped, tag = 'input window, operand 2']
    #allocation7 [shape = 's32[2]{0}', space=sflag, size = 0x8, scoped, tag = 'scoped memory for tpu_custom_call.1']
    #allocation8 [shape = 'u8[512]{0}', space=vmem, size = 0x400, scoped, tag = 'input window, operand 3, single buffered']
    #allocation9 [shape = 'u8[512]{0}', space=vmem, size = 0x400, scoped, tag = 'input window, operand 4, single buffered']
    #allocation10 [shape = 's32[1]{0}', space=sflag, size = 0x4, scoped, tag = 'scoped memory for tpu_custom_call.1']
    #allocation11 [shape = 'u8[512]{0}', space=vmem, size = 0x400, scoped, tag = 'input window, operand 5, single buffered']
    #allocation12 [shape = 'u8[65536]{0}', space=vmem, size = 0x10000, scoped, tag = 'input window, operand 6, single buffered']
    #allocation13 [shape = 's32[1]{0}', space=sflag, size = 0x4, scoped, tag = 'scoped memory for tpu_custom_call.1']
    #allocation14 [shape = 'u8[32768]{0}', space=vmem, size = 0x8000, scoped, tag = 'input window, operand 11, single buffered']
    #allocation15 [shape = 'u8[32768]{0}', space=vmem, size = 0x8000, scoped, tag = 'input window, operand 13, single buffered']
    #allocation16 [shape = 's32[1]{0}', space=sflag, size = 0x4, scoped, tag = 'scoped memory for tpu_custom_call.1']
    #allocation17 [shape = 'u8[32768]{0}', space=vmem, size = 0x8000, scoped, tag = 'input window, operand 14, single buffered']
    #allocation18 [shape = 'u8[16384]{0}', space=vmem, size = 0x4000, scoped, tag = 'output window, operand 0']
    %21 = vsyncpa [#allocation4], 0
    %s22 = scalar_lea.sflag [#allocation4], 1
    %23 = vsyncpa %s22, 0
    %24 = vsyncpa [#allocation7], 0
    %s25 = scalar_lea.sflag [#allocation7], 1
    %26 = vsyncpa %s25, 0
    %27 = vsyncpa [#allocation10], 0
    %28 = vsyncpa [#allocation13], 0
    %29 = vsyncpa [#allocation16], 0
    %30 = vsyncpa [#allocation5], 0
    %s31 = scalar_lea.sflag [#allocation5], 1
    %32 = vsyncpa %s31, 0
    loop: start=0, step=1, limit=6
    $region2: #{tpu_custom_call.1} parent=1 // loop_pre_header
      _
    $region3: #{tpu_custom_call.1} parent=1 // loop_header
      %s34 = sphi 0, %s38
      %p35 = scmp.ge.s32.totalorder %s34, 6
      %s41 = sphi 0, %s53
      %s42 = sphi 0, %s49
      %s43 = sphi 0, %s41
      %s44 = sphi 0, %s42
      %s45 = sphi 0, %s43
      %s46 = sphi 0, %s44
      %s58 = sphi 0, %s60
      %s61 = sphi 0, %s58
      %s62 = sphi 0, %s61
      %s78 = sphi 0, %s62
      %s84 = sphi 0, %s86
      %s87 = sphi 0, %s84
      %s88 = sphi 0, %s87
      %s104 = sphi 0, %s88
      %s110 = sphi 0, %s112
      %s113 = sphi 0, %s110
      %s114 = sphi 0, %s113
      %s130 = sphi 0, %s114
      %s134 = sphi 0, %s134
      %s136 = sphi 0, %s134
      %s137 = sphi 0, %s136
      %s151 = sphi 0, %s137
      %s155 = sphi 0, %s155
      %s157 = sphi 0, %s155
      %s158 = sphi 0, %s157
      %s172 = sphi 0, %s158
      %s176 = sphi 0, %s176
      %s178 = sphi 0, %s176
      %s179 = sphi 0, %s178
      %s193 = sphi 0, %s179
      %s197 = sphi 0, %s197
      %s199 = sphi 0, %s197
      %s200 = sphi 0, %s199
      %s214 = sphi 0, %s200
      %s218 = sphi 0, %s218
      %s220 = sphi 0, %s218
      %s221 = sphi 0, %s220
      %s235 = sphi 0, %s221
      %s239 = sphi 0, %s239
      %s241 = sphi 0, %s239
      %s242 = sphi 0, %s241
      %s256 = sphi 0, %s242
      %s260 = sphi 0, %s260
      %s262 = sphi 0, %s260
      %s263 = sphi 0, %s262
      %s277 = sphi 0, %s263
      %s281 = sphi 0, %s281
      %s283 = sphi 0, %s281
      %s284 = sphi 0, %s283
      %s298 = sphi 0, %s284
      %s302 = sphi 0, %s302
      %s304 = sphi 0, %s302
      %s305 = sphi 0, %s304
      %s319 = sphi 0, %s305
      %s323 = sphi 0, %s323
      %s325 = sphi 0, %s323
      %s326 = sphi 0, %s325
      %s340 = sphi 0, %s326
      %s344 = sphi 0, %s344
      %s346 = sphi 0, %s344
      %s347 = sphi 0, %s346
      %s361 = sphi 0, %s347
      %s365 = sphi 0, %s365
      %s367 = sphi 0, %s365
      %s368 = sphi 0, %s367
      %s382 = sphi 0, %s368
      %s386 = sphi 0, %s386
      %s388 = sphi 0, %s386
      %s389 = sphi 0, %s388
      %s403 = sphi 0, %s389
      %s409 = sphi 0, %s411
      %s412 = sphi 0, %s409
      %s413 = sphi 0, %s412
      %s429 = sphi 0, %s413
    $region4: #{tpu_custom_call.1} parent=1 // loop_header_branch
      %37 = sbr.rel (%p35) target = $region8
    $region5: #{tpu_custom_call.1} parent=1 // loop_body
      %s39 = ssub.s32 %s34, 1
      %s40 = ssub.s32 %s34, 2
      %s47 = sadd.s32 1, %s42
      %p48 = scmp.ge.s32.totalorder %s47, 2
      %s49 = scalar_select %p48, 0, %s47
      %s50 = sadd.s32 1, %s41
      %s51 = scalar_select %p48, %s50, %s41
      %p52 = scmp.ge.s32.totalorder %s51, 2
      %s53 = scalar_select %p52, 0, %s51
      %s54 = ssub.s32 %s41, %s53
      %s55 = ssub.s32 %s42, %s49
      %s56 = sor.u32 %s54, %s55
      %p57 = scmp.eq.s32.totalorder %s56, 0
      %s59 = sadd.s32 %s58, 1
      %s60 = scalar_select %p57, %s58, %s59
      %p63 = pneg %p57
      %p64 = scmp.eq.s32.totalorder %s34, 3
      %p65 = por %p63, %p64
      %p66 = scmp.ne.s32.totalorder %s58, %s61
      %p67 = scmp.eq.s32.totalorder %s34, 0
      %p68 = por %p66, %p67
      %p69 = scmp.ne.s32.totalorder %s58, %s61
      %p70 = scmp.eq.s32.totalorder %s39, 3
      %p71 = por %p69, %p70
      %p72 = scmp.ne.s32.totalorder %s61, %s62
      %p73 = scmp.eq.s32.totalorder %s39, 0
      %p74 = por %p72, %p73
      %p75 = scmp.ne.s32.totalorder %s61, %s62
      %p76 = scmp.eq.s32.totalorder %s40, 3
      %p77 = por %p75, %p76
      %p79 = scmp.ne.s32.totalorder %s62, %s78
      %p80 = scmp.eq.s32.totalorder %s40, 0
      %p81 = por %p79, %p80
      %s82 = ssub.s32 %s41, %s53
      %p83 = scmp.eq.s32.totalorder %s82, 0
      %s85 = sadd.s32 %s84, 1
      %s86 = scalar_select %p83, %s84, %s85
      %p89 = pneg %p83
      %p90 = scmp.eq.s32.totalorder %s34, 3
      %p91 = por %p89, %p90
      %p92 = scmp.ne.s32.totalorder %s84, %s87
      %p93 = scmp.eq.s32.totalorder %s34, 0
      %p94 = por %p92, %p93
      %p95 = scmp.ne.s32.totalorder %s84, %s87
      %p96 = scmp.eq.s32.totalorder %s39, 3
      %p97 = por %p95, %p96
      %p98 = scmp.ne.s32.totalorder %s87, %s88
      %p99 = scmp.eq.s32.totalorder %s39, 0
      %p100 = por %p98, %p99
      %p101 = scmp.ne.s32.totalorder %s87, %s88
      %p102 = scmp.eq.s32.totalorder %s40, 3
      %p103 = por %p101, %p102
      %p105 = scmp.ne.s32.totalorder %s88, %s104
      %p106 = scmp.eq.s32.totalorder %s40, 0
      %p107 = por %p105, %p106
      %s108 = ssub.s32 %s42, %s49
      %p109 = scmp.eq.s32.totalorder %s108, 0
      %s111 = sadd.s32 %s110, 1
      %s112 = scalar_select %p109, %s110, %s111
      %p115 = pneg %p109
      %p116 = scmp.eq.s32.totalorder %s34, 3
      %p117 = por %p115, %p116
      %p118 = scmp.ne.s32.totalorder %s110, %s113
      %p119 = scmp.eq.s32.totalorder %s34, 0
      %p120 = por %p118, %p119
      %p121 = scmp.ne.s32.totalorder %s110, %s113
      %p122 = scmp.eq.s32.totalorder %s39, 3
      %p123 = por %p121, %p122
      %p124 = scmp.ne.s32.totalorder %s113, %s114
      %p125 = scmp.eq.s32.totalorder %s39, 0
      %p126 = por %p124, %p125
      %p127 = scmp.ne.s32.totalorder %s113, %s114
      %p128 = scmp.eq.s32.totalorder %s40, 3
      %p129 = por %p127, %p128
      %p131 = scmp.ne.s32.totalorder %s114, %s130
      %p132 = scmp.eq.s32.totalorder %s40, 0
      %p133 = por %p131, %p132
      %s135 = sadd.s32 %s134, 1
      %p138 = scmp.eq.s32.totalorder %s34, 3
      %p139 = scmp.ne.s32.totalorder %s134, %s136
      %p140 = scmp.eq.s32.totalorder %s34, 0
      %p141 = por %p139, %p140
      %p142 = scmp.ne.s32.totalorder %s134, %s136
      %p143 = scmp.eq.s32.totalorder %s39, 3
      %p144 = por %p142, %p143
      %p145 = scmp.ne.s32.totalorder %s136, %s137
      %p146 = scmp.eq.s32.totalorder %s39, 0
      %p147 = por %p145, %p146
      %p148 = scmp.ne.s32.totalorder %s136, %s137
      %p149 = scmp.eq.s32.totalorder %s40, 3
      %p150 = por %p148, %p149
      %p152 = scmp.ne.s32.totalorder %s137, %s151
      %p153 = scmp.eq.s32.totalorder %s40, 0
      %p154 = por %p152, %p153
      %s156 = sadd.s32 %s155, 1
      %p159 = scmp.eq.s32.totalorder %s34, 3
      %p160 = scmp.ne.s32.totalorder %s155, %s157
      %p161 = scmp.eq.s32.totalorder %s34, 0
      %p162 = por %p160, %p161
      %p163 = scmp.ne.s32.totalorder %s155, %s157
      %p164 = scmp.eq.s32.totalorder %s39, 3
      %p165 = por %p163, %p164
      %p166 = scmp.ne.s32.totalorder %s157, %s158
      %p167 = scmp.eq.s32.totalorder %s39, 0
      %p168 = por %p166, %p167
      %p169 = scmp.ne.s32.totalorder %s157, %s158
      %p170 = scmp.eq.s32.totalorder %s40, 3
      %p171 = por %p169, %p170
      %p173 = scmp.ne.s32.totalorder %s158, %s172
      %p174 = scmp.eq.s32.totalorder %s40, 0
      %p175 = por %p173, %p174
      %s177 = sadd.s32 %s176, 1
      %p180 = scmp.eq.s32.totalorder %s34, 3
      %p181 = scmp.ne.s32.totalorder %s176, %s178
      %p182 = scmp.eq.s32.totalorder %s34, 0
      %p183 = por %p181, %p182
      %p184 = scmp.ne.s32.totalorder %s176, %s178
      %p185 = scmp.eq.s32.totalorder %s39, 3
      %p186 = por %p184, %p185
      %p187 = scmp.ne.s32.totalorder %s178, %s179
      %p188 = scmp.eq.s32.totalorder %s39, 0
      %p189 = por %p187, %p188
      %p190 = scmp.ne.s32.totalorder %s178, %s179
      %p191 = scmp.eq.s32.totalorder %s40, 3
      %p192 = por %p190, %p191
      %p194 = scmp.ne.s32.totalorder %s179, %s193
      %p195 = scmp.eq.s32.totalorder %s40, 0
      %p196 = por %p194, %p195
      %s198 = sadd.s32 %s197, 1
      %p201 = scmp.eq.s32.totalorder %s34, 3
      %p202 = scmp.ne.s32.totalorder %s197, %s199
      %p203 = scmp.eq.s32.totalorder %s34, 0
      %p204 = por %p202, %p203
      %p205 = scmp.ne.s32.totalorder %s197, %s199
      %p206 = scmp.eq.s32.totalorder %s39, 3
      %p207 = por %p205, %p206
      %p208 = scmp.ne.s32.totalorder %s199, %s200
      %p209 = scmp.eq.s32.totalorder %s39, 0
      %p210 = por %p208, %p209
      %p211 = scmp.ne.s32.totalorder %s199, %s200
      %p212 = scmp.eq.s32.totalorder %s40, 3
      %p213 = por %p211, %p212
      %p215 = scmp.ne.s32.totalorder %s200, %s214
      %p216 = scmp.eq.s32.totalorder %s40, 0
      %p217 = por %p215, %p216
      %s219 = sadd.s32 %s218, 1
      %p222 = scmp.eq.s32.totalorder %s34, 3
      %p223 = scmp.ne.s32.totalorder %s218, %s220
      %p224 = scmp.eq.s32.totalorder %s34, 0
      %p225 = por %p223, %p224
      %p226 = scmp.ne.s32.totalorder %s218, %s220
      %p227 = scmp.eq.s32.totalorder %s39, 3
      %p228 = por %p226, %p227
      %p229 = scmp.ne.s32.totalorder %s220, %s221
      %p230 = scmp.eq.s32.totalorder %s39, 0
      %p231 = por %p229, %p230
      %p232 = scmp.ne.s32.totalorder %s220, %s221
      %p233 = scmp.eq.s32.totalorder %s40, 3
      %p234 = por %p232, %p233
      %p236 = scmp.ne.s32.totalorder %s221, %s235
      %p237 = scmp.eq.s32.totalorder %s40, 0
      %p238 = por %p236, %p237
      %s240 = sadd.s32 %s239, 1
      %p243 = scmp.eq.s32.totalorder %s34, 3
      %p244 = scmp.ne.s32.totalorder %s239, %s241
      %p245 = scmp.eq.s32.totalorder %s34, 0
      %p246 = por %p244, %p245
      %p247 = scmp.ne.s32.totalorder %s239, %s241
      %p248 = scmp.eq.s32.totalorder %s39, 3
      %p249 = por %p247, %p248
      %p250 = scmp.ne.s32.totalorder %s241, %s242
      %p251 = scmp.eq.s32.totalorder %s39, 0
      %p252 = por %p250, %p251
      %p253 = scmp.ne.s32.totalorder %s241, %s242
      %p254 = scmp.eq.s32.totalorder %s40, 3
      %p255 = por %p253, %p254
      %p257 = scmp.ne.s32.totalorder %s242, %s256
      %p258 = scmp.eq.s32.totalorder %s40, 0
      %p259 = por %p257, %p258
      %s261 = sadd.s32 %s260, 1
      %p264 = scmp.eq.s32.totalorder %s34, 3
      %p265 = scmp.ne.s32.totalorder %s260, %s262
      %p266 = scmp.eq.s32.totalorder %s34, 0
      %p267 = por %p265, %p266
      %p268 = scmp.ne.s32.totalorder %s260, %s262
      %p269 = scmp.eq.s32.totalorder %s39, 3
      %p270 = por %p268, %p269
      %p271 = scmp.ne.s32.totalorder %s262, %s263
      %p272 = scmp.eq.s32.totalorder %s39, 0
      %p273 = por %p271, %p272
      %p274 = scmp.ne.s32.totalorder %s262, %s263
      %p275 = scmp.eq.s32.totalorder %s40, 3
      %p276 = por %p274, %p275
      %p278 = scmp.ne.s32.totalorder %s263, %s277
      %p279 = scmp.eq.s32.totalorder %s40, 0
      %p280 = por %p278, %p279
      %s282 = sadd.s32 %s281, 1
      %p285 = scmp.eq.s32.totalorder %s34, 3
      %p286 = scmp.ne.s32.totalorder %s281, %s283
      %p287 = scmp.eq.s32.totalorder %s34, 0
      %p288 = por %p286, %p287
      %p289 = scmp.ne.s32.totalorder %s281, %s283
      %p290 = scmp.eq.s32.totalorder %s39, 3
      %p291 = por %p289, %p290
      %p292 = scmp.ne.s32.totalorder %s283, %s284
      %p293 = scmp.eq.s32.totalorder %s39, 0
      %p294 = por %p292, %p293
      %p295 = scmp.ne.s32.totalorder %s283, %s284
      %p296 = scmp.eq.s32.totalorder %s40, 3
      %p297 = por %p295, %p296
      %p299 = scmp.ne.s32.totalorder %s284, %s298
      %p300 = scmp.eq.s32.totalorder %s40, 0
      %p301 = por %p299, %p300
      %s303 = sadd.s32 %s302, 1
      %p306 = scmp.eq.s32.totalorder %s34, 3
      %p307 = scmp.ne.s32.totalorder %s302, %s304
      %p308 = scmp.eq.s32.totalorder %s34, 0
      %p309 = por %p307, %p308
      %p310 = scmp.ne.s32.totalorder %s302, %s304
      %p311 = scmp.eq.s32.totalorder %s39, 3
      %p312 = por %p310, %p311
      %p313 = scmp.ne.s32.totalorder %s304, %s305
      %p314 = scmp.eq.s32.totalorder %s39, 0
      %p315 = por %p313, %p314
      %p316 = scmp.ne.s32.totalorder %s304, %s305
      %p317 = scmp.eq.s32.totalorder %s40, 3
      %p318 = por %p316, %p317
      %p320 = scmp.ne.s32.totalorder %s305, %s319
      %p321 = scmp.eq.s32.totalorder %s40, 0
      %p322 = por %p320, %p321
      %s324 = sadd.s32 %s323, 1
      %p327 = scmp.eq.s32.totalorder %s34, 3
      %p328 = scmp.ne.s32.totalorder %s323, %s325
      %p329 = scmp.eq.s32.totalorder %s34, 0
      %p330 = por %p328, %p329
      %p331 = scmp.ne.s32.totalorder %s323, %s325
      %p332 = scmp.eq.s32.totalorder %s39, 3
      %p333 = por %p331, %p332
      %p334 = scmp.ne.s32.totalorder %s325, %s326
      %p335 = scmp.eq.s32.totalorder %s39, 0
      %p336 = por %p334, %p335
      %p337 = scmp.ne.s32.totalorder %s325, %s326
      %p338 = scmp.eq.s32.totalorder %s40, 3
      %p339 = por %p337, %p338
      %p341 = scmp.ne.s32.totalorder %s326, %s340
      %p342 = scmp.eq.s32.totalorder %s40, 0
      %p343 = por %p341, %p342
      %s345 = sadd.s32 %s344, 1
      %p348 = scmp.eq.s32.totalorder %s34, 3
      %p349 = scmp.ne.s32.totalorder %s344, %s346
      %p350 = scmp.eq.s32.totalorder %s34, 0
      %p351 = por %p349, %p350
      %p352 = scmp.ne.s32.totalorder %s344, %s346
      %p353 = scmp.eq.s32.totalorder %s39, 3
      %p354 = por %p352, %p353
      %p355 = scmp.ne.s32.totalorder %s346, %s347
      %p356 = scmp.eq.s32.totalorder %s39, 0
      %p357 = por %p355, %p356
      %p358 = scmp.ne.s32.totalorder %s346, %s347
      %p359 = scmp.eq.s32.totalorder %s40, 3
      %p360 = por %p358, %p359
      %p362 = scmp.ne.s32.totalorder %s347, %s361
      %p363 = scmp.eq.s32.totalorder %s40, 0
      %p364 = por %p362, %p363
      %s366 = sadd.s32 %s365, 1
      %p369 = scmp.eq.s32.totalorder %s34, 3
      %p370 = scmp.ne.s32.totalorder %s365, %s367
      %p371 = scmp.eq.s32.totalorder %s34, 0
      %p372 = por %p370, %p371
      %p373 = scmp.ne.s32.totalorder %s365, %s367
      %p374 = scmp.eq.s32.totalorder %s39, 3
      %p375 = por %p373, %p374
      %p376 = scmp.ne.s32.totalorder %s367, %s368
      %p377 = scmp.eq.s32.totalorder %s39, 0
      %p378 = por %p376, %p377
      %p379 = scmp.ne.s32.totalorder %s367, %s368
      %p380 = scmp.eq.s32.totalorder %s40, 3
      %p381 = por %p379, %p380
      %p383 = scmp.ne.s32.totalorder %s368, %s382
      %p384 = scmp.eq.s32.totalorder %s40, 0
      %p385 = por %p383, %p384
      %s387 = sadd.s32 %s386, 1
      %p390 = scmp.eq.s32.totalorder %s34, 3
      %p391 = scmp.ne.s32.totalorder %s386, %s388
      %p392 = scmp.eq.s32.totalorder %s34, 0
      %p393 = por %p391, %p392
      %p394 = scmp.ne.s32.totalorder %s386, %s388
      %p395 = scmp.eq.s32.totalorder %s39, 3
      %p396 = por %p394, %p395
      %p397 = scmp.ne.s32.totalorder %s388, %s389
      %p398 = scmp.eq.s32.totalorder %s39, 0
      %p399 = por %p397, %p398
      %p400 = scmp.ne.s32.totalorder %s388, %s389
      %p401 = scmp.eq.s32.totalorder %s40, 3
      %p402 = por %p400, %p401
      %p404 = scmp.ne.s32.totalorder %s389, %s403
      %p405 = scmp.eq.s32.totalorder %s40, 0
      %p406 = por %p404, %p405
      %s407 = ssub.s32 %s41, %s53
      %p408 = scmp.eq.s32.totalorder %s407, 0
      %s410 = sadd.s32 %s409, 1
      %s411 = scalar_select %p408, %s409, %s410
      %p414 = pneg %p408
      %p415 = scmp.eq.s32.totalorder %s34, 3
      %p416 = por %p414, %p415
      %p417 = scmp.ne.s32.totalorder %s409, %s412
      %p418 = scmp.eq.s32.totalorder %s34, 0
      %p419 = por %p417, %p418
      %p420 = scmp.ne.s32.totalorder %s409, %s412
      %p421 = scmp.eq.s32.totalorder %s39, 3
      %p422 = por %p420, %p421
      %p423 = scmp.ne.s32.totalorder %s412, %s413
      %p424 = scmp.eq.s32.totalorder %s39, 0
      %p425 = por %p423, %p424
      %p426 = scmp.ne.s32.totalorder %s412, %s413
      %p427 = scmp.eq.s32.totalorder %s40, 3
      %p428 = por %p426, %p427
      %p430 = scmp.ne.s32.totalorder %s413, %s429
      %p431 = scmp.eq.s32.totalorder %s40, 0
      %p432 = por %p430, %p431
      %p433 = scmp.le.s32.totalorder 1, %s34
      %p434 = scmp.lt.s32.totalorder %s34, 5
      %p435 = pnand %p433, %p434
      %p436 = pneg %p435
      // Predicated region
      $region9: #{tpu_custom_call.1} parent=5 // pred_check
        _
      $region10: #{tpu_custom_call.1} parent=5 // pred_check_branch
        %438 = sbr.rel (%p435) target = $region12
      $region11: #{tpu_custom_call.1} parent=5 // pred_region
        %s439 = ssub.s32 %s34, 1
        // Predicated region
        $region13: #{tpu_custom_call.1} parent=11 // pred_check
          %p440 = pneg %p147
        $region14: #{tpu_custom_call.1} parent=11 // pred_check_branch
          %442 = sbr.rel (%p440) target = $region16
        $region15: #{tpu_custom_call.1} parent=11 // pred_region
          %s444 = ssub.s32 16, 16
          %445 = vsyncadd [#allocation7], %s444
          %s447 = sshll.u32 [#allocation8], 4
          %s448 = int_to_ptr.vmem [resolvable:$true] %s447
          %450 = dma.hbm_to_vmem [thread:$0]  %s3, 16, %s448, [#allocation7]
        $region16: #{tpu_custom_call.1} parent=11 // pred_fallthru
          _
        // Predicated region
        $region17: #{tpu_custom_call.1} parent=11 // pred_check
          %p451 = pneg %p168
        $region18: #{tpu_custom_call.1} parent=11 // pred_check_branch
          %453 = sbr.rel (%p451) target = $region20
        $region19: #{tpu_custom_call.1} parent=11 // pred_region
          %s455 = ssub.s32 16, 16
          %456 = vsyncadd [#allocation10], %s455
          %s458 = sshll.u32 [#allocation9], 4
          %s459 = int_to_ptr.vmem [resolvable:$true] %s458
          %461 = dma.hbm_to_vmem [thread:$0]  %s4, 16, %s459, [#allocation10]
        $region20: #{tpu_custom_call.1} parent=11 // pred_fallthru
          _
        // Predicated region
        $region21: #{tpu_custom_call.1} parent=11 // pred_check
          %p462 = pneg %p189
        $region22: #{tpu_custom_call.1} parent=11 // pred_check_branch
          %464 = sbr.rel (%p462) target = $region24
        $region23: #{tpu_custom_call.1} parent=11 // pred_region
          %s466 = ssub.s32 16, 16
          %467 = vsyncadd [#allocation10], %s466
          %s469 = sshll.u32 [#allocation11], 4
          %s470 = int_to_ptr.vmem [resolvable:$true] %s469
          %472 = dma.hbm_to_vmem [thread:$0]  %s5, 16, %s470, [#allocation10]
        $region24: #{tpu_custom_call.1} parent=11 // pred_fallthru
          _
        // Predicated region
        $region25: #{tpu_custom_call.1} parent=11 // pred_check
          %p473 = pneg %p210
        $region26: #{tpu_custom_call.1} parent=11 // pred_check_branch
          %475 = sbr.rel (%p473) target = $region28
        $region27: #{tpu_custom_call.1} parent=11 // pred_region
          %s477 = ssub.s32 2048, 2048
          %478 = vsyncadd [#allocation13], %s477
          %s479 = sshll.u32 [#allocation12], 4
          %s480 = int_to_ptr.vmem [resolvable:$true] %s479
          %485 = dma.hbm_to_vmem [thread:$0]  %s6, 2048, %s480, [#allocation13], 128, 128, 8
        $region28: #{tpu_custom_call.1} parent=11 // pred_fallthru
          _
        // Predicated region
        $region29: #{tpu_custom_call.1} parent=11 // pred_check
          %p486 = pneg %p231
        $region30: #{tpu_custom_call.1} parent=11 // pred_check_branch
          %488 = sbr.rel (%p486) target = $region32
        $region31: #{tpu_custom_call.1} parent=11 // pred_region
          _
        $region32: #{tpu_custom_call.1} parent=11 // pred_fallthru
          _
        // Predicated region
        $region33: #{tpu_custom_call.1} parent=11 // pred_check
          %p489 = pneg %p252
        $region34: #{tpu_custom_call.1} parent=11 // pred_check_branch
          %491 = sbr.rel (%p489) target = $region36
        $region35: #{tpu_custom_call.1} parent=11 // pred_region
          _
        $region36: #{tpu_custom_call.1} parent=11 // pred_fallthru
          _
        // Predicated region
        $region37: #{tpu_custom_call.1} parent=11 // pred_check
          %p492 = pneg %p273
        $region38: #{tpu_custom_call.1} parent=11 // pred_check_branch
          %494 = sbr.rel (%p492) target = $region40
        $region39: #{tpu_custom_call.1} parent=11 // pred_region
          _
        $region40: #{tpu_custom_call.1} parent=11 // pred_fallthru
          _
        // Predicated region
        $region41: #{tpu_custom_call.1} parent=11 // pred_check
          %p495 = pneg %p294
        $region42: #{tpu_custom_call.1} parent=11 // pred_check_branch
          %497 = sbr.rel (%p495) target = $region44
        $region43: #{tpu_custom_call.1} parent=11 // pred_region
          _
        $region44: #{tpu_custom_call.1} parent=11 // pred_fallthru
          _
        // Predicated region
        $region45: #{tpu_custom_call.1} parent=11 // pred_check
          %p498 = pneg %p315
        $region46: #{tpu_custom_call.1} parent=11 // pred_check_branch
          %500 = sbr.rel (%p498) target = $region48
        $region47: #{tpu_custom_call.1} parent=11 // pred_region
          %s502 = ssub.s32 1024, 1024
          %503 = vsyncadd [#allocation13], %s502
          %s504 = sshll.u32 [#allocation14], 4
          %s505 = int_to_ptr.vmem [resolvable:$true] %s504
          %510 = dma.hbm_to_vmem [thread:$0]  %s11, 1024, %s505, [#allocation13], 64, 64, 4
        $region48: #{tpu_custom_call.1} parent=11 // pred_fallthru
          _
        // Predicated region
        $region49: #{tpu_custom_call.1} parent=11 // pred_check
          %p511 = pneg %p336
        $region50: #{tpu_custom_call.1} parent=11 // pred_check_branch
          %513 = sbr.rel (%p511) target = $region52
        $region51: #{tpu_custom_call.1} parent=11 // pred_region
          _
        $region52: #{tpu_custom_call.1} parent=11 // pred_fallthru
          _
        // Predicated region
        $region53: #{tpu_custom_call.1} parent=11 // pred_check
          %p514 = pneg %p357
        $region54: #{tpu_custom_call.1} parent=11 // pred_check_branch
          %516 = sbr.rel (%p514) target = $region56
        $region55: #{tpu_custom_call.1} parent=11 // pred_region
          %s518 = ssub.s32 1024, 1024
          %519 = vsyncadd [#allocation16], %s518
          %s520 = sshll.u32 [#allocation15], 4
          %s521 = int_to_ptr.vmem [resolvable:$true] %s520
          %526 = dma.hbm_to_vmem [thread:$0]  %s13, 1024, %s521, [#allocation16], 64, 64, 4
        $region56: #{tpu_custom_call.1} parent=11 // pred_fallthru
          _
        // Predicated region
        $region57: #{tpu_custom_call.1} parent=11 // pred_check
          %p527 = pneg %p378
        $region58: #{tpu_custom_call.1} parent=11 // pred_check_branch
          %529 = sbr.rel (%p527) target = $region60
        $region59: #{tpu_custom_call.1} parent=11 // pred_region
          %s531 = ssub.s32 1024, 1024
          %532 = vsyncadd [#allocation16], %s531
          %s533 = sshll.u32 [#allocation17], 4
          %s534 = int_to_ptr.vmem [resolvable:$true] %s533
          %539 = dma.hbm_to_vmem [thread:$0]  %s14, 1024, %s534, [#allocation16], 64, 64, 4
        $region60: #{tpu_custom_call.1} parent=11 // pred_fallthru
          _
        // Predicated region
        $region61: #{tpu_custom_call.1} parent=11 // pred_check
          %p540 = pneg %p399
        $region62: #{tpu_custom_call.1} parent=11 // pred_check_branch
          %542 = sbr.rel (%p540) target = $region64
        $region63: #{tpu_custom_call.1} parent=11 // pred_region
          _
        $region64: #{tpu_custom_call.1} parent=11 // pred_fallthru
          _
      $region12: #{tpu_custom_call.1} parent=5 // pred_fallthru
        _
      %p543 = scmp.lt.s32.totalorder %s34, 4
      // Predicated region
      $region65: #{tpu_custom_call.1} parent=5 // pred_check
        %p544 = pneg %p543
      $region66: #{tpu_custom_call.1} parent=5 // pred_check_branch
        %546 = sbr.rel (%p544) target = $region68
      $region67: #{tpu_custom_call.1} parent=5 // pred_region
        // Predicated region
        $region69: #{tpu_custom_call.1} parent=67 // pred_check
          %p547 = pneg %p68
        $region70: #{tpu_custom_call.1} parent=67 // pred_check_branch
          %549 = sbr.rel (%p547) target = $region72
        $region71: #{tpu_custom_call.1} parent=67 // pred_region
          %s550 = sand.u32 %s58, 1
          %s551 = scalar_lea.sflag [#allocation4], %s550
          %s552 = sand.u32 %s58, 1
          %s553 = smul.addr %s552, 16
          %s554 = scalar_lea.vmem [#allocation3], %s553
          %s555 = smul.u32 2, %s41
          %s557 = ssub.s32 256, 256
          %558 = vsyncadd %s551, %s557
          %s559 = smul.addr %s555, 2
          %s560 = sadd.s32 %s42, %s559
          %s561 = smul.addr %s560, 128
          %s562 = scalar_lea.hbm %s0, %s561
          %s563 = sshll.u32 %s554, 4
          %s564 = int_to_ptr.vmem [resolvable:$true] %s563
          %569 = dma.hbm_to_vmem [thread:$0]  %s562, 256, %s564, %s551, 256, 128, 8
        $region72: #{tpu_custom_call.1} parent=67 // pred_fallthru
          _
        // Predicated region
        $region73: #{tpu_custom_call.1} parent=67 // pred_check
          %p570 = pneg %p94
        $region74: #{tpu_custom_call.1} parent=67 // pred_check_branch
          %572 = sbr.rel (%p570) target = $region76
        $region75: #{tpu_custom_call.1} parent=67 // pred_region
          %s573 = smul.u32 2, %s41
          %p574 = scmp.lt.s32.totalorder %s573, 3
          %s575 = scalar_select %p574, %s573, 3
          %s576 = smul.addr %s575, 8
          %s577 = scalar_lea.vmem %s1, %s576
          %s578 = smul.u32 2, %s41
        $region76: #{tpu_custom_call.1} parent=67 // pred_fallthru
          _
        // Predicated region
        $region77: #{tpu_custom_call.1} parent=67 // pred_check
          %p579 = pneg %p120
        $region78: #{tpu_custom_call.1} parent=67 // pred_check_branch
          %581 = sbr.rel (%p579) target = $region80
        $region79: #{tpu_custom_call.1} parent=67 // pred_region
          %s582 = sand.u32 %s34, 1
          %s583 = scalar_lea.sflag [#allocation7], %s582
          %s584 = sand.u32 %s110, 1
          %s585 = smul.addr %s584, 64
          %s586 = scalar_lea.vmem [#allocation6], %s585
          %s587 = smul.u32 16, %s42
          %s589 = ssub.s32 1024, 1024
          %590 = vsyncadd %s583, %s589
          %s591 = smul.addr %s587, 64
          %s592 = scalar_lea.hbm %s2, %s591
          %s593 = sshll.u32 %s586, 4
          %s594 = int_to_ptr.vmem [resolvable:$true] %s593
          %599 = dma.hbm_to_vmem [thread:$0]  %s592, 1024, %s594, %s583, 64, 64, 4
        $region80: #{tpu_custom_call.1} parent=67 // pred_fallthru
          _
      $region68: #{tpu_custom_call.1} parent=5 // pred_fallthru
        _
      %p600 = scmp.le.s32.totalorder 1, %s34
      %p601 = scmp.lt.s32.totalorder %s34, 5
      %p602 = pnand %p600, %p601
      %p603 = pneg %p602
      // Predicated region
      $region81: #{tpu_custom_call.1} parent=5 // pred_check
        _
      $region82: #{tpu_custom_call.1} parent=5 // pred_check_branch
        %605 = sbr.rel (%p602) target = $region84
      $region83: #{tpu_custom_call.1} parent=5 // pred_region
        %s606 = ssub.s32 %s34, 1
        %s607 = sand.u32 %s61, 1
        %s608 = scalar_lea.sflag [#allocation4], %s607
        %s609 = sand.u32 %s61, 1
        %s610 = smul.addr %s609, 16
        %s611 = scalar_lea.vmem [#allocation3], %s610
        // Predicated region
        $region85: #{tpu_custom_call.1} parent=83 // pred_check
          %p612 = pneg %p74
        $region86: #{tpu_custom_call.1} parent=83 // pred_check_branch
          %614 = sbr.rel (%p612) target = $region88
        $region87: #{tpu_custom_call.1} parent=83 // pred_region
          %615 = dma.done %s608, 256
        $region88: #{tpu_custom_call.1} parent=83 // pred_fallthru
          _
        %s616 = sand.u32 %s39, 1
        %s617 = scalar_lea.sflag [#allocation7], %s616
        %s618 = sand.u32 %s113, 1
        %s619 = smul.addr %s618, 64
        %s620 = scalar_lea.vmem [#allocation6], %s619
        // Predicated region
        $region89: #{tpu_custom_call.1} parent=83 // pred_check
          %p621 = pneg %p126
        $region90: #{tpu_custom_call.1} parent=83 // pred_check_branch
          %623 = sbr.rel (%p621) target = $region92
        $region91: #{tpu_custom_call.1} parent=83 // pred_region
          %624 = dma.done %s617, 1024
        $region92: #{tpu_custom_call.1} parent=83 // pred_fallthru
          _
        // Predicated region
        $region93: #{tpu_custom_call.1} parent=83 // pred_check
          %p625 = pneg %p147
        $region94: #{tpu_custom_call.1} parent=83 // pred_check_branch
          %627 = sbr.rel (%p625) target = $region96
        $region95: #{tpu_custom_call.1} parent=83 // pred_region
          %628 = dma.done [#allocation7], 16
        $region96: #{tpu_custom_call.1} parent=83 // pred_fallthru
          _
        // Predicated region
        $region97: #{tpu_custom_call.1} parent=83 // pred_check
          %p629 = pneg %p168
        $region98: #{tpu_custom_call.1} parent=83 // pred_check_branch
          %631 = sbr.rel (%p629) target = $region100
        $region99: #{tpu_custom_call.1} parent=83 // pred_region
          %632 = dma.done [#allocation10], 16
        $region100: #{tpu_custom_call.1} parent=83 // pred_fallthru
          _
        // Predicated region
        $region101: #{tpu_custom_call.1} parent=83 // pred_check
          %p633 = pneg %p189
        $region102: #{tpu_custom_call.1} parent=83 // pred_check_branch
          %635 = sbr.rel (%p633) target = $region104
        $region103: #{tpu_custom_call.1} parent=83 // pred_region
          %636 = dma.done [#allocation10], 16
        $region104: #{tpu_custom_call.1} parent=83 // pred_fallthru
          _
        // Predicated region
        $region105: #{tpu_custom_call.1} parent=83 // pred_check
          %p637 = pneg %p210
        $region106: #{tpu_custom_call.1} parent=83 // pred_check_branch
          %639 = sbr.rel (%p637) target = $region108
        $region107: #{tpu_custom_call.1} parent=83 // pred_region
          %640 = dma.done [#allocation13], 2048
        $region108: #{tpu_custom_call.1} parent=83 // pred_fallthru
          _
        // Predicated region
        $region109: #{tpu_custom_call.1} parent=83 // pred_check
          %p641 = pneg %p315
        $region110: #{tpu_custom_call.1} parent=83 // pred_check_branch
          %643 = sbr.rel (%p641) target = $region112
        $region111: #{tpu_custom_call.1} parent=83 // pred_region
          %644 = dma.done [#allocation13], 1024
        $region112: #{tpu_custom_call.1} parent=83 // pred_fallthru
          _
        // Predicated region
        $region113: #{tpu_custom_call.1} parent=83 // pred_check
          %p645 = pneg %p357
        $region114: #{tpu_custom_call.1} parent=83 // pred_check_branch
          %647 = sbr.rel (%p645) target = $region116
        $region115: #{tpu_custom_call.1} parent=83 // pred_region
          %648 = dma.done [#allocation16], 1024
        $region116: #{tpu_custom_call.1} parent=83 // pred_fallthru
          _
        // Predicated region
        $region117: #{tpu_custom_call.1} parent=83 // pred_check
          %p649 = pneg %p378
        $region118: #{tpu_custom_call.1} parent=83 // pred_check_branch
          %651 = sbr.rel (%p649) target = $region120
        $region119: #{tpu_custom_call.1} parent=83 // pred_region
          %652 = dma.done [#allocation16], 1024
        $region120: #{tpu_custom_call.1} parent=83 // pred_fallthru
          _
        %s653 = sand.u32 %s61, 1
        %s654 = scalar_lea.sflag [#allocation4], %s653
        %s655 = sand.u32 %s61, 1
        %s656 = smul.addr %s655, 16
        %s657 = scalar_lea.vmem [#allocation3], %s656
        %p658 = pneg %p74
        %p659 = pneg %p71
        %s660 = smul.u32 2, %s43
        %p661 = scmp.lt.s32.totalorder %s660, 3
        %s662 = scalar_select %p661, %s660, 3
        %s663 = smul.addr %s662, 8
        %s664 = scalar_lea.vmem %s1, %s663
        %p665 = pneg %p100
        %p666 = pneg %p97
        %s667 = sand.u32 %s39, 1
        %s668 = scalar_lea.sflag [#allocation7], %s667
        %s669 = sand.u32 %s113, 1
        %s670 = smul.addr %s669, 64
        %s671 = scalar_lea.vmem [#allocation6], %s670
        %p672 = pneg %p126
        %p673 = pneg %p123
        %p674 = pneg %p147
        %p675 = pneg %p144
        %p676 = pneg %p168
        %p677 = pneg %p165
        %p678 = pneg %p189
        %p679 = pneg %p186
        %p680 = pneg %p210
        %p681 = pneg %p207
        %p682 = pneg %p231
        %p683 = pneg %p228
        %p684 = pneg %p252
        %p685 = pneg %p249
        %p686 = pneg %p273
        %p687 = pneg %p270
        %p688 = pneg %p294
        %p689 = pneg %p291
        %p690 = pneg %p315
        %p691 = pneg %p312
        %p692 = pneg %p336
        %p693 = pneg %p333
        %p694 = pneg %p357
        %p695 = pneg %p354
        %p696 = pneg %p378
        %p697 = pneg %p375
        %p698 = pneg %p399
        %p699 = pneg %p396
        %p700 = pneg %p425
        %p701 = pneg %p422
        %s702 = sand.u32 %s412, 1
        %s703 = scalar_lea.sflag [#allocation5], %s702
        %s704 = sand.u32 %s412, 1
        %s705 = smul.addr %s704, 16
        %s706 = scalar_lea.vmem [#allocation18], %s705
        %s707 = smul.u32 2, %s43
        %s708 = smul.u32 2, %s43
        %p709 = scmp.lt.s32.totalorder %s708, 3
        %s710 = scalar_select %p709, %s708, 3
        %s711 = smul.addr %s710, 8
        %s712 = scalar_lea.vmem %s1, %s711
        %s713 = smul.u32 2, %s43
        %s714 = smul.u32 16, %s44
        %s715 = smul.u32 2, %s43
        %p717 = scmp.eq.s32.totalorder %s44, 0
        // Predicated region
        $region121: #{tpu_custom_call.1} parent=83 // pred_check
          %p718 = pneg %p717
        $region122: #{tpu_custom_call.1} parent=83 // pred_check_branch
          %720 = sbr.rel (%p718) target = $region124
        $region123: #{tpu_custom_call.1} parent=83 // pred_region
          %721 = vst [vmem:[#allocation2] sm:$0xff] 0.0
          %722 = vst [vmem:[#allocation2 + $0x8] sm:$0xff] 0.0
        $region124: #{tpu_custom_call.1} parent=83 // pred_fallthru
          _
        %v723 = vld [vmem:[%s611] sm:$0xff]
        %v724 = vld [vmem:[%s611 + $0x8] sm:$0xff]
        %v725 = vpack.c.bf16 %v724, %v723
        %v726 = vld [vmem:[#allocation2] sm:$0xff]
        %v727 = vld [vmem:[#allocation2 + $0x8] sm:$0xff]
        %v728 = vld [vmem:[%s620] sm:$0xf]
        %v729 = vld [vmem:[%s620 + $0x4] sm:$0xf]
        %v730 = vld [vmem:[%s620 + $0x8] sm:$0xf]
        %v731 = vld [vmem:[%s620 + $0xc] sm:$0xf]
        %v732 = vld [vmem:[%s620 + $0x10] sm:$0xf]
        %v733 = vld [vmem:[%s620 + $0x14] sm:$0xf]
        %v734 = vld [vmem:[%s620 + $0x18] sm:$0xf]
        %v735 = vld [vmem:[%s620 + $0x1c] sm:$0xf]
        %v736 = vld [vmem:[%s620 + $0x20] sm:$0xf]
        %v737 = vld [vmem:[%s620 + $0x24] sm:$0xf]
        %v738 = vld [vmem:[%s620 + $0x28] sm:$0xf]
        %v739 = vld [vmem:[%s620 + $0x2c] sm:$0xf]
        %v740 = vld [vmem:[%s620 + $0x30] sm:$0xf]
        %v741 = vld [vmem:[%s620 + $0x34] sm:$0xf]
        %v742 = vld [vmem:[%s620 + $0x38] sm:$0xf]
        %v743 = vld [vmem:[%s620 + $0x3c] sm:$0xf]
        %v760 = vunpack.c.l.b16 %v728
        %v761 = vunpack.c.l.b16 %v729
        %v762 = vunpack.c.l.b16 %v730
        %v763 = vunpack.c.l.b16 %v731
        %v764 = vunpack.c.l.b16 %v732
        %v765 = vunpack.c.l.b16 %v733
        %v766 = vunpack.c.l.b16 %v734
        %v767 = vunpack.c.l.b16 %v735
        %v768 = vunpack.c.l.b16 %v736
        %v769 = vunpack.c.l.b16 %v737
        %v770 = vunpack.c.l.b16 %v738
        %v771 = vunpack.c.l.b16 %v739
        %v772 = vunpack.c.l.b16 %v740
        %v773 = vunpack.c.l.b16 %v741
        %v774 = vunpack.c.l.b16 %v742
        %v775 = vunpack.c.l.b16 %v743
        %v776 = vpack.c.b16 %v761, %v760
        %v777 = vpack.c.b16 %v763, %v762
        %v778 = vpack.c.b16 %v765, %v764
        %v779 = vpack.c.b16 %v767, %v766
        %v780 = vpack.c.b16 %v769, %v768
        %v781 = vpack.c.b16 %v771, %v770
        %v782 = vpack.c.b16 %v773, %v772
        %v783 = vpack.c.b16 %v775, %v774
        %792 = vmatprep.subr.bf16.mxu0 0
        %793 = vmatpush1.bf16.msra.mxu0 %v776
        %794 = vmatprep.subr.bf16.mxu0 0
        %795 = vmatpush1.bf16.msra.mxu0 %v777
        %796 = vmatprep.subr.bf16.mxu0 0
        %797 = vmatpush1.bf16.msra.mxu0 %v778
        %798 = vmatprep.subr.bf16.mxu0 0
        %799 = vmatpush1.bf16.msra.mxu0 %v779
        %800 = vmatprep.subr.bf16.mxu0 0
        %801 = vmatpush1.bf16.msra.mxu0 %v780
        %802 = vmatprep.subr.bf16.mxu0 0
        %803 = vmatpush1.bf16.msra.mxu0 %v781
        %804 = vmatprep.subr.bf16.mxu0 0
        %805 = vmatpush1.bf16.msra.mxu0 %v782
        %806 = vmatprep.subr.bf16.mxu0 0
        %807 = vmatpush1.bf16.msra.mxu0 %v783
        %808 = vmatprep.subr.bf16.mxu0 0
        %809 = vmatpush1.bf16.msra.mxu0 0
        %810 = vmatprep.subr.bf16.mxu0 0
        %811 = vmatpush1.bf16.msra.mxu0 0
        %812 = vmatprep.subr.bf16.mxu0 0
        %813 = vmatpush1.bf16.msra.mxu0 0
        %814 = vmatprep.subr.bf16.mxu0 0
        %815 = vmatpush1.bf16.msra.mxu0 0
        %816 = vmatprep.subr.bf16.mxu0 0
        %817 = vmatpush1.bf16.msra.mxu0 0
        %818 = vmatprep.subr.bf16.mxu0 0
        %819 = vmatpush1.bf16.msra.mxu0 0
        %820 = vmatprep.subr.bf16.mxu0 0
        %821 = vmatpush1.bf16.msra.mxu0 0
        %822 = vmatprep.subr.bf16.mxu0 0
        %823 = vmatpush1.bf16.msra.mxu0 0
        %824 = vmatprep.mubr.bf16.mxu0 0
        %825 = vmatmul.mubr.bf16.gmra.mrb[0].mxu0 %v725
        %v826 = vpop.f32.mrb[0].mxu0
        %v827 = vadd.f32 0.0, %v826
        %v828 = vpop.f32.mrb[0].mxu0
        %v829 = vpop.f32.mrb[0].mxu0
        %v830 = vadd.f32 0.0, %v829
        %v831 = vpop.f32.mrb[0].mxu0
        %832 = vdwg.mxu0
        %v833 = vadd.f32 %v726, %v827
        %v834 = vadd.f32 %v727, %v830
        %835 = vst [vmem:[#allocation2] sm:$0xff] %v833
        %836 = vst [vmem:[#allocation2 + $0x8] sm:$0xff] %v834
        %p837 = scmp.eq.s32.totalorder %s44, 1
        // Predicated region
        $region125: #{tpu_custom_call.1} parent=83 // pred_check
          %p838 = pneg %p837
        $region126: #{tpu_custom_call.1} parent=83 // pred_check_branch
          %840 = sbr.rel (%p838) target = $region128
        $region127: #{tpu_custom_call.1} parent=83 // pred_region
          %v841 = vld [vmem:[#allocation2] sm:$0xff]
          %v842 = vld [vmem:[#allocation2 + $0x8] sm:$0xff]
          %v843 = vld [vmem:[#allocation8] sm:$0x1]
          %v845 = vlaneseq
          %v846 = vshrl.u32 %v845, 7
          %v847 = vsub.s32 0, %v846
          %v848 = vrot.slane %v843, %v847
          %v850 = vadd.f32 %v841, %v848
          %v851 = vadd.f32 %v842, %v848
          %852 = vadd.xlane.f32.xlu0 %v850
          %v853 = vpop.xlane.xlu0 %852
          %854 = vadd.xlane.f32.xlu0 %v851
          %v855 = vpop.xlane.xlu0 %854
          %v856 = vmul.f32 %v853, 0.0625
          %v857 = vmul.f32 %v855, 0.0625
          %v858 = vlaneseq
          %v859 = vand.u32 %v858, 127
          %vm860 = vcmp.lt.s32.totalorder %v859, 16
          %v861 = vsub.f32 %v850, %v856
          %v862 = vsub.f32 %v851, %v857
          %v863 = vsel %vm860, 1, 0
          %vm864 = vcmp.eq.s32.totalorder %v863, 1
          %v865 = vsel %vm864, %v861, 0.0
          %v866 = vsel %vm864, %v862, 0.0
          %v867 = vmul.f32 %v865, %v865
          %v868 = vmul.f32 %v866, %v866
          %869 = vadd.xlane.f32.xlu0 %v867
          %v870 = vpop.xlane.xlu0 %869
          %871 = vadd.xlane.f32.xlu0 %v868
          %v872 = vpop.xlane.xlu0 %871
          %v873 = vmul.f32 %v870, 0.0625
          %v874 = vmul.f32 %v872, 0.0625
          %v875 = vadd.f32 %v873, 1e-05
          %v876 = vadd.f32 %v874, 1e-05
          %v877 = vrsqrt.pop %v875
          %v878 = vrsqrt.pop %v876
          %v879 = vmul.f32 %v865, %v877
          %v880 = vmul.f32 %v866, %v878
          %v881 = vld [vmem:[#allocation9] sm:$0x1]
          %v883 = vlaneseq
          %v884 = vshrl.u32 %v883, 7
          %v885 = vsub.s32 0, %v884
          %v886 = vrot.slane %v881, %v885
          %v888 = vmul.f32 %v879, %v886
          %v889 = vmul.f32 %v880, %v886
          %v890 = vld [vmem:[#allocation11] sm:$0x1]
          %v892 = vlaneseq
          %v893 = vshrl.u32 %v892, 7
          %v894 = vsub.s32 0, %v893
          %v895 = vrot.slane %v890, %v894
          %v897 = vadd.f32 %v888, %v895
          %v898 = vadd.f32 %v889, %v895
          %v899 = vtanh.pop %v897
          %v900 = vtanh.pop %v898
          %v901 = vpack.c.bf16 %v900, %v899
          %v902 = vld [vmem:[%s712] sm:$0xff]
          %v903 = vld [vmem:[%s712 + $0x8] sm:$0xff]
          %v904 = vpack.c.bf16 %v903, %v902
          %v905 = vld [vmem:[#allocation12] sm:$0xff]
          %v906 = vld [vmem:[#allocation12 + $0x8] sm:$0xff]
          %v907 = vld [vmem:[#allocation12 + $0x10] sm:$0xff]
          %v908 = vld [vmem:[#allocation12 + $0x18] sm:$0xff]
          %v909 = vld [vmem:[#allocation12 + $0x20] sm:$0xff]
          %v910 = vld [vmem:[#allocation12 + $0x28] sm:$0xff]
          %v911 = vld [vmem:[#allocation12 + $0x30] sm:$0xff]
          %v912 = vld [vmem:[#allocation12 + $0x38] sm:$0xff]
          %v913 = vld [vmem:[#allocation12 + $0x40] sm:$0xff]
          %v914 = vld [vmem:[#allocation12 + $0x48] sm:$0xff]
          %v915 = vld [vmem:[#allocation12 + $0x50] sm:$0xff]
          %v916 = vld [vmem:[#allocation12 + $0x58] sm:$0xff]
          %v917 = vld [vmem:[#allocation12 + $0x60] sm:$0xff]
          %v918 = vld [vmem:[#allocation12 + $0x68] sm:$0xff]
          %v919 = vld [vmem:[#allocation12 + $0x70] sm:$0xff]
          %v920 = vld [vmem:[#allocation12 + $0x78] sm:$0xff]
          %v921 = vld [vmem:[%s7] sm:$0xf]
          %v924 = vunpack.c.l.s4 1983009808
          %v925 = vunpack.c.0.s8 %v924
          %v926 = vlaneseq
          %v927 = vshrl.u32 %v926, 7
          %v928 = vsub.s32 %v925, %v927
          %v929 = vrot.slane %v921, %v928
          %v930 = vcombine.high %v929, %v929
          %vm931 = vcmask 31744
          %v933 = vsel %vm931, %v904, 0
          %vm935 = vcmask 1041408
          %v937 = vsel %vm935, %v929, 0
          %v940 = vsel %vm935, %v930, 0
          %942 = vmatprep.subr.bf16.mxu0 %v940
          %943 = vmatpush1.bf16.msra.mxu0 %v937
          %944 = vmatprep.subr.bf16.mxu0 0
          %945 = vmatpush1.bf16.msra.mxu0 0
          %946 = vmatprep.subr.bf16.mxu0 0
          %947 = vmatpush1.bf16.msra.mxu0 0
          %948 = vmatprep.subr.bf16.mxu0 0
          %949 = vmatpush1.bf16.msra.mxu0 0
          %950 = vmatprep.subr.bf16.mxu0 0
          %951 = vmatpush1.bf16.msra.mxu0 0
          %952 = vmatprep.subr.bf16.mxu0 0
          %953 = vmatpush1.bf16.msra.mxu0 0
          %954 = vmatprep.subr.bf16.mxu0 0
          %955 = vmatpush1.bf16.msra.mxu0 0
          %956 = vmatprep.subr.bf16.mxu0 0
          %957 = vmatpush1.bf16.msra.mxu0 0
          %958 = vmatprep.subr.bf16.mxu0 0
          %959 = vmatpush1.bf16.msra.mxu0 0
          %960 = vmatprep.subr.bf16.mxu0 0
          %961 = vmatpush1.bf16.msra.mxu0 0
          %962 = vmatprep.subr.bf16.mxu0 0
          %963 = vmatpush1.bf16.msra.mxu0 0
          %964 = vmatprep.subr.bf16.mxu0 0
          %965 = vmatpush1.bf16.msra.mxu0 0
          %966 = vmatprep.subr.bf16.mxu0 0
          %967 = vmatpush1.bf16.msra.mxu0 0
          %968 = vmatprep.subr.bf16.mxu0 0
          %969 = vmatpush1.bf16.msra.mxu0 0
          %970 = vmatprep.subr.bf16.mxu0 0
          %971 = vmatpush1.bf16.msra.mxu0 0
          %972 = vmatprep.subr.bf16.mxu0 0
          %973 = vmatpush1.bf16.msra.mxu0 0
          %974 = vmatprep.mubr.bf16.mxu0 0
          %975 = vmatmul.mubr.bf16.gmra.mrb[0].mxu0 %v933
          %v976 = vpop.f32.mrb[0].mxu0
          %v977 = vadd.f32 0.0, %v976
          %v978 = vpop.f32.mrb[0].mxu0
          %v979 = vadd.f32 0.0, %v978
          %v980 = vpop.f32.mrb[0].mxu0
          %v981 = vadd.f32 0.0, %v980
          %v982 = vpop.f32.mrb[0].mxu0
          %v983 = vadd.f32 0.0, %v982
          %984 = vdwg.mxu0
          %v1001 = vunpack.c.l.b16 %v905
          %v1002 = vunpack.c.h.b16 %v905
          %v1003 = vunpack.c.l.b16 %v906
          %v1004 = vunpack.c.h.b16 %v906
          %v1005 = vunpack.c.l.b16 %v907
          %v1006 = vunpack.c.h.b16 %v907
          %v1007 = vunpack.c.l.b16 %v908
          %v1008 = vunpack.c.h.b16 %v908
          %v1009 = vunpack.c.l.b16 %v909
          %v1010 = vunpack.c.h.b16 %v909
          %v1011 = vunpack.c.l.b16 %v910
          %v1012 = vunpack.c.h.b16 %v910
          %v1013 = vunpack.c.l.b16 %v911
          %v1014 = vunpack.c.h.b16 %v911
          %v1015 = vunpack.c.l.b16 %v912
          %v1016 = vunpack.c.h.b16 %v912
          %v1017 = vunpack.c.l.b16 %v913
          %v1018 = vunpack.c.h.b16 %v913
          %v1019 = vunpack.c.l.b16 %v914
          %v1020 = vunpack.c.h.b16 %v914
          %v1021 = vunpack.c.l.b16 %v915
          %v1022 = vunpack.c.h.b16 %v915
          %v1023 = vunpack.c.l.b16 %v916
          %v1024 = vunpack.c.h.b16 %v916
          %v1025 = vunpack.c.l.b16 %v917
          %v1026 = vunpack.c.h.b16 %v917
          %v1027 = vunpack.c.l.b16 %v918
          %v1028 = vunpack.c.h.b16 %v918
          %v1029 = vunpack.c.l.b16 %v919
          %v1030 = vunpack.c.h.b16 %v919
          %v1031 = vunpack.c.l.b16 %v920
          %v1032 = vunpack.c.h.b16 %v920
          %v1033 = vpack.c.b16 %v1003, %v1001
          %v1034 = vpack.c.b16 %v1004, %v1002
          %v1035 = vpack.c.b16 %v1007, %v1005
          %v1036 = vpack.c.b16 %v1008, %v1006
          %v1037 = vpack.c.b16 %v1011, %v1009
          %v1038 = vpack.c.b16 %v1012, %v1010
          %v1039 = vpack.c.b16 %v1015, %v1013
          %v1040 = vpack.c.b16 %v1016, %v1014
          %v1041 = vpack.c.b16 %v1019, %v1017
          %v1042 = vpack.c.b16 %v1020, %v1018
          %v1043 = vpack.c.b16 %v1023, %v1021
          %v1044 = vpack.c.b16 %v1024, %v1022
          %v1045 = vpack.c.b16 %v1027, %v1025
          %v1046 = vpack.c.b16 %v1028, %v1026
          %v1047 = vpack.c.b16 %v1031, %v1029
          %v1048 = vpack.c.b16 %v1032, %v1030
          %1065 = vmatprep.subr.bf16.mxu0 %v1034
          %1066 = vmatpush1.bf16.msra.mxu0 %v1033
          %1067 = vmatprep.subr.bf16.mxu0 %v1036
          %1068 = vmatpush1.bf16.msra.mxu0 %v1035
          %1069 = vmatprep.subr.bf16.mxu0 %v1038
          %1070 = vmatpush1.bf16.msra.mxu0 %v1037
          %1071 = vmatprep.subr.bf16.mxu0 %v1040
          %1072 = vmatpush1.bf16.msra.mxu0 %v1039
          %1073 = vmatprep.subr.bf16.mxu0 %v1042
          %1074 = vmatpush1.bf16.msra.mxu0 %v1041
          %1075 = vmatprep.subr.bf16.mxu0 %v1044
          %1076 = vmatpush1.bf16.msra.mxu0 %v1043
          %1077 = vmatprep.subr.bf16.mxu0 %v1046
          %1078 = vmatpush1.bf16.msra.mxu0 %v1045
          %1079 = vmatprep.subr.bf16.mxu0 %v1048
          %1080 = vmatpush1.bf16.msra.mxu0 %v1047
          %1081 = vmatprep.subr.bf16.mxu0 0
          %1082 = vmatpush1.bf16.msra.mxu0 0
          %1083 = vmatprep.subr.bf16.mxu0 0
          %1084 = vmatpush1.bf16.msra.mxu0 0
          %1085 = vmatprep.subr.bf16.mxu0 0
          %1086 = vmatpush1.bf16.msra.mxu0 0
          %1087 = vmatprep.subr.bf16.mxu0 0
          %1088 = vmatpush1.bf16.msra.mxu0 0
          %1089 = vmatprep.subr.bf16.mxu0 0
          %1090 = vmatpush1.bf16.msra.mxu0 0
          %1091 = vmatprep.subr.bf16.mxu0 0
          %1092 = vmatpush1.bf16.msra.mxu0 0
          %1093 = vmatprep.subr.bf16.mxu0 0
          %1094 = vmatpush1.bf16.msra.mxu0 0
          %1095 = vmatprep.subr.bf16.mxu0 0
          %1096 = vmatpush1.bf16.msra.mxu0 0
          %1097 = vmatprep.mubr.bf16.mxu0 0
          %1098 = vmatmul.mubr.bf16.gmra.mrb[0].mxu0 %v901
          %v1099 = vpop.f32.mrb[0].mxu0
          %v1100 = vadd.f32 %v977, %v1099
          %v1101 = vpop.f32.mrb[0].mxu0
          %v1102 = vadd.f32 %v979, %v1101
          %v1103 = vpop.f32.mrb[0].mxu0
          %v1104 = vadd.f32 %v981, %v1103
          %v1105 = vpop.f32.mrb[0].mxu0
          %v1106 = vadd.f32 %v983, %v1105
          %1107 = vdwg.mxu0
          %v1108 = vld [vmem:[%s8] sm:$0x3]
          %v1110 = vlaneseq
          %v1111 = vshrl.u32 %v1110, 7
          %v1112 = vsub.s32 0, %v1111
          %v1113 = vrot.slane %v1108, %v1112
          %v1114 = vlaneseq
          %v1115 = vshrl.u32 %v1114, 7
          %v1116 = vsub.s32 1, %v1115
          %v1117 = vrot.slane %v1108, %v1116
          %v1120 = vadd.f32 %v1100, %v1113
          %v1121 = vadd.f32 %v1102, %v1117
          %v1122 = vadd.f32 %v1104, %v1113
          %v1123 = vadd.f32 %v1106, %v1117
          %v1124 = vmax.f32 %v1120, 0.0
          %v1125 = vmax.f32 %v1121, 0.0
          %v1126 = vmax.f32 %v1122, 0.0
          %v1127 = vmax.f32 %v1123, 0.0
          %v1128 = vpack.c.bf16 %v1126, %v1124
          %v1129 = vpack.c.bf16 %v1127, %v1125
          %v1130 = vld [vmem:[%s9] sm:$0xf]
          %v1131 = vld [vmem:[%s9 + $0x4] sm:$0xf]
          %v1132 = vld [vmem:[%s9 + $0x8] sm:$0xf]
          %v1133 = vld [vmem:[%s9 + $0xc] sm:$0xf]
          %v1134 = vld [vmem:[%s9 + $0x10] sm:$0xf]
          %v1135 = vld [vmem:[%s9 + $0x14] sm:$0xf]
          %v1136 = vld [vmem:[%s9 + $0x18] sm:$0xf]
          %v1137 = vld [vmem:[%s9 + $0x1c] sm:$0xf]
          %v1138 = vld [vmem:[%s9 + $0x20] sm:$0xf]
          %v1139 = vld [vmem:[%s9 + $0x24] sm:$0xf]
          %v1140 = vld [vmem:[%s9 + $0x28] sm:$0xf]
          %v1141 = vld [vmem:[%s9 + $0x2c] sm:$0xf]
          %v1142 = vld [vmem:[%s9 + $0x30] sm:$0xf]
          %v1143 = vld [vmem:[%s9 + $0x34] sm:$0xf]
          %v1144 = vld [vmem:[%s9 + $0x38] sm:$0xf]
          %v1145 = vld [vmem:[%s9 + $0x3c] sm:$0xf]
          %v1146 = vld [vmem:[%s10] sm:$0x1]
          %v1148 = vlaneseq
          %v1149 = vshrl.u32 %v1148, 7
          %v1150 = vsub.s32 0, %v1149
          %v1151 = vrot.slane %v1146, %v1150
          %v1169 = vunpack.c.l.b16 %v1130
          %v1170 = vunpack.c.l.b16 %v1131
          %v1171 = vunpack.c.l.b16 %v1132
          %v1172 = vunpack.c.l.b16 %v1133
          %v1173 = vunpack.c.l.b16 %v1134
          %v1174 = vunpack.c.l.b16 %v1135
          %v1175 = vunpack.c.l.b16 %v1136
          %v1176 = vunpack.c.l.b16 %v1137
          %v1177 = vunpack.c.l.b16 %v1138
          %v1178 = vunpack.c.l.b16 %v1139
          %v1179 = vunpack.c.l.b16 %v1140
          %v1180 = vunpack.c.l.b16 %v1141
          %v1181 = vunpack.c.l.b16 %v1142
          %v1182 = vunpack.c.l.b16 %v1143
          %v1183 = vunpack.c.l.b16 %v1144
          %v1184 = vunpack.c.l.b16 %v1145
          %v1185 = vpack.c.b16 %v1170, %v1169
          %v1186 = vpack.c.b16 %v1172, %v1171
          %v1187 = vpack.c.b16 %v1174, %v1173
          %v1188 = vpack.c.b16 %v1176, %v1175
          %v1189 = vpack.c.b16 %v1178, %v1177
          %v1190 = vpack.c.b16 %v1180, %v1179
          %v1191 = vpack.c.b16 %v1182, %v1181
          %v1192 = vpack.c.b16 %v1184, %v1183
          %1201 = vmatprep.subr.bf16.mxu0 0
          %1202 = vmatpush1.bf16.msra.mxu0 %v1185
          %1203 = vmatprep.subr.bf16.mxu0 0
          %1204 = vmatpush1.bf16.msra.mxu0 %v1186
          %1205 = vmatprep.subr.bf16.mxu0 0
          %1206 = vmatpush1.bf16.msra.mxu0 %v1187
          %1207 = vmatprep.subr.bf16.mxu0 0
          %1208 = vmatpush1.bf16.msra.mxu0 %v1188
          %1209 = vmatprep.subr.bf16.mxu0 0
          %1210 = vmatpush1.bf16.msra.mxu0 %v1189
          %1211 = vmatprep.subr.bf16.mxu0 0
          %1212 = vmatpush1.bf16.msra.mxu0 %v1190
          %1213 = vmatprep.subr.bf16.mxu0 0
          %1214 = vmatpush1.bf16.msra.mxu0 %v1191
          %1215 = vmatprep.subr.bf16.mxu0 0
          %1216 = vmatpush1.bf16.msra.mxu0 %v1192
          %1217 = vmatprep.subr.bf16.mxu0 0
          %1218 = vmatpush1.bf16.msra.mxu0 0
          %1219 = vmatprep.subr.bf16.mxu0 0
          %1220 = vmatpush1.bf16.msra.mxu0 0
          %1221 = vmatprep.subr.bf16.mxu0 0
          %1222 = vmatpush1.bf16.msra.mxu0 0
          %1223 = vmatprep.subr.bf16.mxu0 0
          %1224 = vmatpush1.bf16.msra.mxu0 0
          %1225 = vmatprep.subr.bf16.mxu0 0
          %1226 = vmatpush1.bf16.msra.mxu0 0
          %1227 = vmatprep.subr.bf16.mxu0 0
          %1228 = vmatpush1.bf16.msra.mxu0 0
          %1229 = vmatprep.subr.bf16.mxu0 0
          %1230 = vmatpush1.bf16.msra.mxu0 0
          %1231 = vmatprep.subr.bf16.mxu0 0
          %1232 = vmatpush1.bf16.msra.mxu0 0
          %1233 = vmatprep.mubr.bf16.mxu0 0
          %1234 = vmatmul.mubr.bf16.gmra.mrb[0].mxu0 %v1128
          %v1235 = vpop.f32.mrb[0].mxu0
          %v1236 = vadd.f32 %v1151, %v1235
          %v1237 = vpop.f32.mrb[0].mxu0
          %v1238 = vpop.f32.mrb[0].mxu0
          %v1239 = vadd.f32 %v1151, %v1238
          %v1240 = vpop.f32.mrb[0].mxu0
          %1241 = vdwg.mxu0
          %v1242 = vmax.f32 %v1236, 0.0
          %v1243 = vmax.f32 %v1239, 0.0
          %v1244 = vpack.c.bf16 %v1243, %v1242
          %v1245 = vld [vmem:[#allocation14] sm:$0xf]
          %v1246 = vld [vmem:[#allocation14 + $0x4] sm:$0xf]
          %v1247 = vld [vmem:[#allocation14 + $0x8] sm:$0xf]
          %v1248 = vld [vmem:[#allocation14 + $0xc] sm:$0xf]
          %v1249 = vld [vmem:[#allocation14 + $0x10] sm:$0xf]
          %v1250 = vld [vmem:[#allocation14 + $0x14] sm:$0xf]
          %v1251 = vld [vmem:[#allocation14 + $0x18] sm:$0xf]
          %v1252 = vld [vmem:[#allocation14 + $0x1c] sm:$0xf]
          %v1253 = vld [vmem:[#allocation14 + $0x20] sm:$0xf]
          %v1254 = vld [vmem:[#allocation14 + $0x24] sm:$0xf]
          %v1255 = vld [vmem:[#allocation14 + $0x28] sm:$0xf]
          %v1256 = vld [vmem:[#allocation14 + $0x2c] sm:$0xf]
          %v1257 = vld [vmem:[#allocation14 + $0x30] sm:$0xf]
          %v1258 = vld [vmem:[#allocation14 + $0x34] sm:$0xf]
          %v1259 = vld [vmem:[#allocation14 + $0x38] sm:$0xf]
          %v1260 = vld [vmem:[#allocation14 + $0x3c] sm:$0xf]
          %v1261 = vld [vmem:[%s12] sm:$0x1]
          %v1263 = vlaneseq
          %v1264 = vshrl.u32 %v1263, 7
          %v1265 = vsub.s32 0, %v1264
          %v1266 = vrot.slane %v1261, %v1265
          %v1284 = vunpack.c.l.b16 %v1245
          %v1285 = vunpack.c.l.b16 %v1246
          %v1286 = vunpack.c.l.b16 %v1247
          %v1287 = vunpack.c.l.b16 %v1248
          %v1288 = vunpack.c.l.b16 %v1249
          %v1289 = vunpack.c.l.b16 %v1250
          %v1290 = vunpack.c.l.b16 %v1251
          %v1291 = vunpack.c.l.b16 %v1252
          %v1292 = vunpack.c.l.b16 %v1253
          %v1293 = vunpack.c.l.b16 %v1254
          %v1294 = vunpack.c.l.b16 %v1255
          %v1295 = vunpack.c.l.b16 %v1256
          %v1296 = vunpack.c.l.b16 %v1257
          %v1297 = vunpack.c.l.b16 %v1258
          %v1298 = vunpack.c.l.b16 %v1259
          %v1299 = vunpack.c.l.b16 %v1260
          %v1300 = vpack.c.b16 %v1285, %v1284
          %v1301 = vpack.c.b16 %v1287, %v1286
          %v1302 = vpack.c.b16 %v1289, %v1288
          %v1303 = vpack.c.b16 %v1291, %v1290
          %v1304 = vpack.c.b16 %v1293, %v1292
          %v1305 = vpack.c.b16 %v1295, %v1294
          %v1306 = vpack.c.b16 %v1297, %v1296
          %v1307 = vpack.c.b16 %v1299, %v1298
          %1316 = vmatprep.subr.bf16.mxu0 0
          %1317 = vmatpush1.bf16.msra.mxu0 %v1300
          %1318 = vmatprep.subr.bf16.mxu0 0
          %1319 = vmatpush1.bf16.msra.mxu0 %v1301
          %1320 = vmatprep.subr.bf16.mxu0 0
          %1321 = vmatpush1.bf16.msra.mxu0 %v1302
          %1322 = vmatprep.subr.bf16.mxu0 0
          %1323 = vmatpush1.bf16.msra.mxu0 %v1303
          %1324 = vmatprep.subr.bf16.mxu0 0
          %1325 = vmatpush1.bf16.msra.mxu0 %v1304
          %1326 = vmatprep.subr.bf16.mxu0 0
          %1327 = vmatpush1.bf16.msra.mxu0 %v1305
          %1328 = vmatprep.subr.bf16.mxu0 0
          %1329 = vmatpush1.bf16.msra.mxu0 %v1306
          %1330 = vmatprep.subr.bf16.mxu0 0
          %1331 = vmatpush1.bf16.msra.mxu0 %v1307
          %1332 = vmatprep.subr.bf16.mxu0 0
          %1333 = vmatpush1.bf16.msra.mxu0 0
          %1334 = vmatprep.subr.bf16.mxu0 0
          %1335 = vmatpush1.bf16.msra.mxu0 0
          %1336 = vmatprep.subr.bf16.mxu0 0
          %1337 = vmatpush1.bf16.msra.mxu0 0
          %1338 = vmatprep.subr.bf16.mxu0 0
          %1339 = vmatpush1.bf16.msra.mxu0 0
          %1340 = vmatprep.subr.bf16.mxu0 0
          %1341 = vmatpush1.bf16.msra.mxu0 0
          %1342 = vmatprep.subr.bf16.mxu0 0
          %1343 = vmatpush1.bf16.msra.mxu0 0
          %1344 = vmatprep.subr.bf16.mxu0 0
          %1345 = vmatpush1.bf16.msra.mxu0 0
          %1346 = vmatprep.subr.bf16.mxu0 0
          %1347 = vmatpush1.bf16.msra.mxu0 0
          %1348 = vmatprep.mubr.bf16.mxu0 0
          %1349 = vmatmul.mubr.bf16.gmra.mrb[0].mxu0 %v1129
          %v1350 = vpop.f32.mrb[0].mxu0
          %v1351 = vadd.f32 %v1266, %v1350
          %v1352 = vpop.f32.mrb[0].mxu0
          %v1353 = vpop.f32.mrb[0].mxu0
          %v1354 = vadd.f32 %v1266, %v1353
          %v1355 = vpop.f32.mrb[0].mxu0
          %1356 = vdwg.mxu0
          %v1357 = vmax.f32 %v1351, 0.0
          %v1358 = vmax.f32 %v1354, 0.0
          %v1359 = vpack.c.bf16 %v1358, %v1357
          %v1360 = vld [vmem:[#allocation15] sm:$0xf]
          %v1361 = vld [vmem:[#allocation15 + $0x4] sm:$0xf]
          %v1362 = vld [vmem:[#allocation15 + $0x8] sm:$0xf]
          %v1363 = vld [vmem:[#allocation15 + $0xc] sm:$0xf]
          %v1364 = vld [vmem:[#allocation15 + $0x10] sm:$0xf]
          %v1365 = vld [vmem:[#allocation15 + $0x14] sm:$0xf]
          %v1366 = vld [vmem:[#allocation15 + $0x18] sm:$0xf]
          %v1367 = vld [vmem:[#allocation15 + $0x1c] sm:$0xf]
          %v1368 = vld [vmem:[#allocation15 + $0x20] sm:$0xf]
          %v1369 = vld [vmem:[#allocation15 + $0x24] sm:$0xf]
          %v1370 = vld [vmem:[#allocation15 + $0x28] sm:$0xf]
          %v1371 = vld [vmem:[#allocation15 + $0x2c] sm:$0xf]
          %v1372 = vld [vmem:[#allocation15 + $0x30] sm:$0xf]
          %v1373 = vld [vmem:[#allocation15 + $0x34] sm:$0xf]
          %v1374 = vld [vmem:[#allocation15 + $0x38] sm:$0xf]
          %v1375 = vld [vmem:[#allocation15 + $0x3c] sm:$0xf]
          %v1376 = vld [vmem:[#allocation17] sm:$0xf]
          %v1377 = vld [vmem:[#allocation17 + $0x4] sm:$0xf]
          %v1378 = vld [vmem:[#allocation17 + $0x8] sm:$0xf]
          %v1379 = vld [vmem:[#allocation17 + $0xc] sm:$0xf]
          %v1380 = vld [vmem:[#allocation17 + $0x10] sm:$0xf]
          %v1381 = vld [vmem:[#allocation17 + $0x14] sm:$0xf]
          %v1382 = vld [vmem:[#allocation17 + $0x18] sm:$0xf]
          %v1383 = vld [vmem:[#allocation17 + $0x1c] sm:$0xf]
          %v1384 = vld [vmem:[#allocation17 + $0x20] sm:$0xf]
          %v1385 = vld [vmem:[#allocation17 + $0x24] sm:$0xf]
          %v1386 = vld [vmem:[#allocation17 + $0x28] sm:$0xf]
          %v1387 = vld [vmem:[#allocation17 + $0x2c] sm:$0xf]
          %v1388 = vld [vmem:[#allocation17 + $0x30] sm:$0xf]
          %v1389 = vld [vmem:[#allocation17 + $0x34] sm:$0xf]
          %v1390 = vld [vmem:[#allocation17 + $0x38] sm:$0xf]
          %v1391 = vld [vmem:[#allocation17 + $0x3c] sm:$0xf]
          %v1408 = vunpack.c.l.b16 %v1376
          %v1409 = vunpack.c.l.b16 %v1377
          %v1410 = vunpack.c.l.b16 %v1378
          %v1411 = vunpack.c.l.b16 %v1379
          %v1412 = vunpack.c.l.b16 %v1380
          %v1413 = vunpack.c.l.b16 %v1381
          %v1414 = vunpack.c.l.b16 %v1382
          %v1415 = vunpack.c.l.b16 %v1383
          %v1416 = vunpack.c.l.b16 %v1384
          %v1417 = vunpack.c.l.b16 %v1385
          %v1418 = vunpack.c.l.b16 %v1386
          %v1419 = vunpack.c.l.b16 %v1387
          %v1420 = vunpack.c.l.b16 %v1388
          %v1421 = vunpack.c.l.b16 %v1389
          %v1422 = vunpack.c.l.b16 %v1390
          %v1423 = vunpack.c.l.b16 %v1391
          %v1424 = vpack.c.b16 %v1409, %v1408
          %v1425 = vpack.c.b16 %v1411, %v1410
          %v1426 = vpack.c.b16 %v1413, %v1412
          %v1427 = vpack.c.b16 %v1415, %v1414
          %v1428 = vpack.c.b16 %v1417, %v1416
          %v1429 = vpack.c.b16 %v1419, %v1418
          %v1430 = vpack.c.b16 %v1421, %v1420
          %v1431 = vpack.c.b16 %v1423, %v1422
          %1440 = vmatprep.subr.bf16.mxu0 0
          %1441 = vmatpush1.bf16.msra.mxu0 %v1424
          %1442 = vmatprep.subr.bf16.mxu0 0
          %1443 = vmatpush1.bf16.msra.mxu0 %v1425
          %1444 = vmatprep.subr.bf16.mxu0 0
          %1445 = vmatpush1.bf16.msra.mxu0 %v1426
          %1446 = vmatprep.subr.bf16.mxu0 0
          %1447 = vmatpush1.bf16.msra.mxu0 %v1427
          %1448 = vmatprep.subr.bf16.mxu0 0
          %1449 = vmatpush1.bf16.msra.mxu0 %v1428
          %1450 = vmatprep.subr.bf16.mxu0 0
          %1451 = vmatpush1.bf16.msra.mxu0 %v1429
          %1452 = vmatprep.subr.bf16.mxu0 0
          %1453 = vmatpush1.bf16.msra.mxu0 %v1430
          %1454 = vmatprep.subr.bf16.mxu0 0
          %1455 = vmatpush1.bf16.msra.mxu0 %v1431
          %1456 = vmatprep.subr.bf16.mxu0 0
          %1457 = vmatpush1.bf16.msra.mxu0 0
          %1458 = vmatprep.subr.bf16.mxu0 0
          %1459 = vmatpush1.bf16.msra.mxu0 0
          %1460 = vmatprep.subr.bf16.mxu0 0
          %1461 = vmatpush1.bf16.msra.mxu0 0
          %1462 = vmatprep.subr.bf16.mxu0 0
          %1463 = vmatpush1.bf16.msra.mxu0 0
          %1464 = vmatprep.subr.bf16.mxu0 0
          %1465 = vmatpush1.bf16.msra.mxu0 0
          %1466 = vmatprep.subr.bf16.mxu0 0
          %1467 = vmatpush1.bf16.msra.mxu0 0
          %1468 = vmatprep.subr.bf16.mxu0 0
          %1469 = vmatpush1.bf16.msra.mxu0 0
          %1470 = vmatprep.subr.bf16.mxu0 0
          %1471 = vmatpush1.bf16.msra.mxu0 0
          %1472 = vmatprep.mubr.bf16.mxu0 0
          %1473 = vmatmul.mubr.bf16.gmra.mrb[0].mxu0 %v1359
          %v1474 = vpop.f32.mrb[0].mxu0
          %v1475 = vadd.f32 0.0, %v1474
          %v1476 = vpop.f32.mrb[0].mxu0
          %v1477 = vpop.f32.mrb[0].mxu0
          %v1478 = vadd.f32 0.0, %v1477
          %v1479 = vpop.f32.mrb[0].mxu0
          %1480 = vdwg.mxu0
          %v1497 = vunpack.c.l.b16 %v1360
          %v1498 = vunpack.c.l.b16 %v1361
          %v1499 = vunpack.c.l.b16 %v1362
          %v1500 = vunpack.c.l.b16 %v1363
          %v1501 = vunpack.c.l.b16 %v1364
          %v1502 = vunpack.c.l.b16 %v1365
          %v1503 = vunpack.c.l.b16 %v1366
          %v1504 = vunpack.c.l.b16 %v1367
          %v1505 = vunpack.c.l.b16 %v1368
          %v1506 = vunpack.c.l.b16 %v1369
          %v1507 = vunpack.c.l.b16 %v1370
          %v1508 = vunpack.c.l.b16 %v1371
          %v1509 = vunpack.c.l.b16 %v1372
          %v1510 = vunpack.c.l.b16 %v1373
          %v1511 = vunpack.c.l.b16 %v1374
          %v1512 = vunpack.c.l.b16 %v1375
          %v1513 = vpack.c.b16 %v1498, %v1497
          %v1514 = vpack.c.b16 %v1500, %v1499
          %v1515 = vpack.c.b16 %v1502, %v1501
          %v1516 = vpack.c.b16 %v1504, %v1503
          %v1517 = vpack.c.b16 %v1506, %v1505
          %v1518 = vpack.c.b16 %v1508, %v1507
          %v1519 = vpack.c.b16 %v1510, %v1509
          %v1520 = vpack.c.b16 %v1512, %v1511
          %1529 = vmatprep.subr.bf16.mxu0 0
          %1530 = vmatpush1.bf16.msra.mxu0 %v1513
          %1531 = vmatprep.subr.bf16.mxu0 0
          %1532 = vmatpush1.bf16.msra.mxu0 %v1514
          %1533 = vmatprep.subr.bf16.mxu0 0
          %1534 = vmatpush1.bf16.msra.mxu0 %v1515
          %1535 = vmatprep.subr.bf16.mxu0 0
          %1536 = vmatpush1.bf16.msra.mxu0 %v1516
          %1537 = vmatprep.subr.bf16.mxu0 0
          %1538 = vmatpush1.bf16.msra.mxu0 %v1517
          %1539 = vmatprep.subr.bf16.mxu0 0
          %1540 = vmatpush1.bf16.msra.mxu0 %v1518
          %1541 = vmatprep.subr.bf16.mxu0 0
          %1542 = vmatpush1.bf16.msra.mxu0 %v1519
          %1543 = vmatprep.subr.bf16.mxu0 0
          %1544 = vmatpush1.bf16.msra.mxu0 %v1520
          %1545 = vmatprep.subr.bf16.mxu0 0
          %1546 = vmatpush1.bf16.msra.mxu0 0
          %1547 = vmatprep.subr.bf16.mxu0 0
          %1548 = vmatpush1.bf16.msra.mxu0 0
          %1549 = vmatprep.subr.bf16.mxu0 0
          %1550 = vmatpush1.bf16.msra.mxu0 0
          %1551 = vmatprep.subr.bf16.mxu0 0
          %1552 = vmatpush1.bf16.msra.mxu0 0
          %1553 = vmatprep.subr.bf16.mxu0 0
          %1554 = vmatpush1.bf16.msra.mxu0 0
          %1555 = vmatprep.subr.bf16.mxu0 0
          %1556 = vmatpush1.bf16.msra.mxu0 0
          %1557 = vmatprep.subr.bf16.mxu0 0
          %1558 = vmatpush1.bf16.msra.mxu0 0
          %1559 = vmatprep.subr.bf16.mxu0 0
          %1560 = vmatpush1.bf16.msra.mxu0 0
          %1561 = vmatprep.mubr.bf16.mxu0 0
          %1562 = vmatmul.mubr.bf16.gmra.mrb[0].mxu0 %v1244
          %v1563 = vpop.f32.mrb[0].mxu0
          %v1564 = vadd.f32 %v1475, %v1563
          %v1565 = vpop.f32.mrb[0].mxu0
          %v1566 = vpop.f32.mrb[0].mxu0
          %v1567 = vadd.f32 %v1478, %v1566
          %v1568 = vpop.f32.mrb[0].mxu0
          %1569 = vdwg.mxu0
          %v1570 = vld [vmem:[%s15] sm:$0x1]
          %v1572 = vlaneseq
          %v1573 = vshrl.u32 %v1572, 7
          %v1574 = vsub.s32 0, %v1573
          %v1575 = vrot.slane %v1570, %v1574
          %v1577 = vadd.f32 %v1564, %v1575
          %v1578 = vadd.f32 %v1567, %v1575
          %1579 = vst [vmem:[%s706] sm:$0xff] %v1577
          %1580 = vst [vmem:[%s706 + $0x8] sm:$0xff] %v1578
        $region128: #{tpu_custom_call.1} parent=83 // pred_fallthru
          _
        %s1581 = sand.u32 %s412, 1
        %s1582 = scalar_lea.sflag [#allocation5], %s1581
        %s1583 = sand.u32 %s412, 1
        %s1584 = smul.addr %s1583, 16
        %s1585 = scalar_lea.vmem [#allocation18], %s1584
        // Predicated region
        $region129: #{tpu_custom_call.1} parent=83 // pred_check
          %p1586 = pneg %p422
        $region130: #{tpu_custom_call.1} parent=83 // pred_check_branch
          %1588 = sbr.rel (%p1586) target = $region132
        $region131: #{tpu_custom_call.1} parent=83 // pred_region
          %s1589 = smul.u32 2, %s43
          %s1591 = ssub.s32 256, 256
          %1592 = vsyncadd %s1582, %s1591
          %s1593 = smul.addr %s1589, 128
          %s1594 = scalar_lea.hbm %s16, %s1593
          %s1595 = sshll.u32 %s1585, 4
          %s1596 = int_to_ptr.vmem [resolvable:$true] %s1595
          %1601 = dma.vmem_to_hbm [thread:$0]  %s1596, 256, %s1594, %s1582, 128, 128, 8
        $region132: #{tpu_custom_call.1} parent=83 // pred_fallthru
          _
      $region84: #{tpu_custom_call.1} parent=5 // pred_fallthru
        _
      %p1602 = scmp.le.s32.totalorder 2, %s34
      // Predicated region
      $region133: #{tpu_custom_call.1} parent=5 // pred_check
        %p1603 = pneg %p1602
      $region134: #{tpu_custom_call.1} parent=5 // pred_check_branch
        %1605 = sbr.rel (%p1603) target = $region136
      $region135: #{tpu_custom_call.1} parent=5 // pred_region
        %s1606 = ssub.s32 %s34, 2
        // Predicated region
        $region137: #{tpu_custom_call.1} parent=135 // pred_check
          %p1607 = pneg %p428
        $region138: #{tpu_custom_call.1} parent=135 // pred_check_branch
          %1609 = sbr.rel (%p1607) target = $region140
        $region139: #{tpu_custom_call.1} parent=135 // pred_region
          %s1610 = sand.u32 %s413, 1
          %s1611 = scalar_lea.sflag [#allocation5], %s1610
          %s1612 = sand.u32 %s413, 1
          %s1613 = smul.addr %s1612, 16
          %s1614 = scalar_lea.vmem [#allocation18], %s1613
          %1615 = dma.done %s1611, 256
        $region140: #{tpu_custom_call.1} parent=135 // pred_fallthru
          _
      $region136: #{tpu_custom_call.1} parent=5 // pred_fallthru
        _
    $region6: #{tpu_custom_call.1} parent=1 // loop_footer
      %s38 = sadd.s32 1, %s34
    $region7: #{tpu_custom_call.1} parent=1 // loop_footer_branch
      %33 = sbr.rel target = $region3
    $region8: #{tpu_custom_call.1} parent=1 // loop_exit
      _
    %1616 = vsyncpa [#allocation4], 1
    %s1617 = scalar_lea.sflag [#allocation4], 1
    %1618 = vsyncpa %s1617, 1
    %1619 = vsyncpa [#allocation7], 1
    %s1620 = scalar_lea.sflag [#allocation7], 1
    %1621 = vsyncpa %s1620, 1
    %1622 = vsyncpa [#allocation10], 1
    %1623 = vsyncpa [#allocation13], 1
    %1624 = vsyncpa [#allocation16], 1
    %1625 = vsyncpa [#allocation5], 1
    %s1626 = scalar_lea.sflag [#allocation5], 1
    %1627 = vsyncpa %s1626, 1

</llo_original>
